<compile_context>
chip_gen: v6e
topology: v6e:2x2x1
jax: 0.10.0
libtpu: 0.0.40
codegen_flags: <defaults>
</compile_context>

<pallas_src>
import functools

import jax
import jax.numpy as jnp
from jax.experimental import pallas as pl
from jax.experimental.pallas import tpu as pltpu

EMBEDDING_DIM = 32
ATTENTION_HEADS = 4
HEAD_DIM = EMBEDDING_DIM // ATTENTION_HEADS  # 8
NEG_INF = -1e30  # finite sentinel: -inf is NaN-prone under bf16 / fully masked rows


def fused_heads_kernel(x_ref, w_ref, b_ref, o_ref, *,
                       seq_len, num_heads, head_dim, compute_dtype):
    """x_ref: (MB, E) flattened tokens; w_ref: (E, 3*NH*H); b_ref: (1, 3*NH*H);
    o_ref: (MB, NH*H) lane-dense output.  MB = batch_block * seq_len."""
    MB, E = x_ref.shape
    T = seq_len
    BB = MB // T
    NH, H = num_heads, head_dim
    D = NH * H  # fused head width

    def mxu_in(a):
        # Optionally cast MXU operands (bf16); accumulation stays f32.
        return a if compute_dtype is None else a.astype(compute_dtype)

    # Single fused QKV projection: (MB, E) @ (E, 3*D) -> (MB, 3*D).
    qkv = jnp.dot(mxu_in(x_ref[...]), mxu_in(w_ref[...]),
                  preferred_element_type=jnp.float32)
    qkv = qkv + b_ref[...].astype(jnp.float32)

    # Fold 1/sqrt(H) into Q; q/k/v split lands at 32-lane-aligned offsets.
    inv_scale = jnp.float32(1.0 / (H ** 0.5))
    q_all = qkv[:, :D] * inv_scale
    k_all = qkv[:, D:2 * D]
    v_all = qkv[:, 2 * D:3 * D]

    # Causal mask shared by all batches/heads (finite sentinel).
    row = jax.lax.broadcasted_iota(jnp.int32, (T, T), 0)
    col = jax.lax.broadcasted_iota(jnp.int32, (T, T), 1)
    causal = col > row

    head_outs = []
    for h in range(NH):  # static unroll; NH is tiny
        sl = slice(h * H, (h + 1) * H)
        q = q_all[:, sl].reshape(BB, T, H)
        k = k_all[:, sl].reshape(BB, T, H)
        v = v_all[:, sl].reshape(BB, T, H)

        # Batched Q @ K^T, contracting the last (H) axes directly.
        s = jnp.einsum('bqd,bkd->bqk', mxu_in(q), mxu_in(k),
                       preferred_element_type=jnp.float32)       # (BB, T, T)
        s = jnp.where(causal, jnp.float32(NEG_INF), s)

        # Stable softmax with deferred normalization (applied after PV matmul).
        m = jnp.max(s, axis=-1, keepdims=True)
        e = jnp.exp(s - m)
        denom = jnp.sum(e, axis=-1, keepdims=True)
        r = pl.reciprocal(denom, approx=True)     # EUP slot
        r = r * (2.0 - denom * r)                 # one Newton step -> f32 accuracy

        out_un = jnp.einsum('bqk,bkd->bqd', mxu_in(e), mxu_in(v),
                            preferred_element_type=jnp.float32)  # (BB, T, H)
        out = out_un * r                          # (BB,T,H) mul instead of (BB,T,T)
        head_outs.append(out.reshape(MB, H))

    # One lane-dense 32-wide store instead of four 8-lane masked stores.
    o_ref[...] = jnp.concatenate(head_outs, axis=-1).astype(o_ref.dtype)


def heads_forward(x, w_qkv, b_qkv, *, num_heads=ATTENTION_HEADS,
                  batch_blocks=1, compute_dtype=None, vmem_limit_bytes=None):
    """Fused multi-head causal attention (num_heads independent `Head` modules).

    x: (B, T, E); w_qkv: (E, 3*num_heads*H) = [Q_heads | K_heads | V_heads];
    b_qkv: (1, 3*num_heads*H).  Returns (B, T, num_heads*H).
    num_heads=1 reproduces the original single `Head` module exactly.

    batch_blocks: batch-block grid size. Keep 1 for tiny shapes; raise it only
    when each block carries enough work to hide the ~0.35us per-step overhead
    (then it also double-buffers the HBM<->VMEM traffic).
    compute_dtype: jnp.bfloat16 feeds the MXU bf16 operands (v5e/v6e/v7x all
    bf16-native); only worth it when the einsums dominate (large T).
    vmem_limit_bytes: raise explicitly when scaling B/T (v5e scoped default is
    16 MiB; v7x physical VMEM is 64 MiB).
    """
    B, T, E = x.shape
    threeD = w_qkv.shape[1]
    D = threeD // 3                       # num_heads * head_dim
    H = D // num_heads
    assert B % batch_blocks == 0
    BB = B // batch_blocks
    M, MB = B * T, BB * T
    if batch_blocks > 1:
        assert MB % 8 == 0, "per-block token count must be a multiple of 8"

    # Wrapper-side flatten: free in XLA, guarantees a clean tiled DMA slab.
    x2 = x.reshape(M, E)

    kernel = functools.partial(fused_heads_kernel, seq_len=T, num_heads=num_heads,
                               head_dim=H, compute_dtype=compute_dtype)

    cost = pl.CostEstimate(
        flops=2 * M * E * threeD + num_heads * 4 * B * T * T * H,
        transcendentals=num_heads * B * T * T,
        bytes_accessed=4 * (M * E + E * threeD + threeD + M * D),
    )

    out2 = pl.pallas_call(
        kernel,
        out_shape=jax.ShapeDtypeStruct((M, D), x.dtype),
        grid_spec=pltpu.PrefetchScalarGridSpec(
            num_scalar_prefetch=0,
            grid=(batch_blocks,),
            in_specs=[
                pl.BlockSpec((MB, E), lambda i: (i, 0)),
                pl.BlockSpec((E, threeD), lambda i: (0, 0)),
                pl.BlockSpec((1, threeD), lambda i: (0, 0)),
            ],
            out_specs=pl.BlockSpec((MB, D), lambda i: (i, 0)),
        ),
        compiler_params=pltpu.CompilerParams(
            dimension_semantics=("parallel",),
            vmem_limit_bytes=vmem_limit_bytes),
        cost_estimate=cost,
    )(x2, w_qkv, b_qkv)

    return out2.reshape(B, T, D)


def reference_single_head(x, wq, wk, wv, bq, bk, bv):
    """Pure-JAX transcription of the PyTorch Head.forward."""
    q = x @ wq + bq
    k = x @ wk + bk
    v = x @ wv + bv
    scores = (q @ jnp.swapaxes(k, -2, -1)) / jnp.sqrt(jnp.float32(HEAD_DIM))
    T = scores.shape[-1]
    mask = jnp.triu(jnp.ones((T, T), dtype=bool), k=1)
    scores = jnp.where(mask, -jnp.inf, scores)
    attn = jax.nn.softmax(scores, axis=-1)
    return attn @ v


if __name__ == "__main__":
    key = jax.random.PRNGKey(0)
    B, T, E, H, NH = 2, 8, EMBEDDING_DIM, HEAD_DIM, ATTENTION_HEADS

    kx, kw = jax.random.split(key)
    x = jax.random.normal(kx, (B, T, E), dtype=jnp.float32)

    # Deterministic per-head parameters (Linear weights stored transposed: (E, H)).
    bound = 1.0 / jnp.sqrt(jnp.float32(E))
    wkeys = jax.random.split(kw, NH * 6)
    wq, wk_, wv, bq, bk_, bv = [], [], [], [], [], []
    for h in range(NH):
        ks = wkeys[h * 6:(h + 1) * 6]
        wq.append(jax.random.uniform(ks[0], (E, H), jnp.float32, -bound, bound))
        wk_.append(jax.random.uniform(ks[1], (E, H), jnp.float32, -bound, bound))
        wv.append(jax.random.uniform(ks[2], (E, H), jnp.float32, -bound, bound))
        bq.append(jax.random.uniform(ks[3], (1, H), jnp.float32, -bound, bound))
        bk_.append(jax.random.uniform(ks[4], (1, H), jnp.float32, -bound, bound))
        bv.append(jax.random.uniform(ks[5], (1, H), jnp.float32, -bound, bound))

    # Fused parameter layout: [Q heads | K heads | V heads], each block (E, NH*H).
    w_qkv = jnp.concatenate(
        [jnp.concatenate(wq, axis=1),
         jnp.concatenate(wk_, axis=1),
         jnp.concatenate(wv, axis=1)], axis=1)            # (E, 3*E) = (32, 96)
    b_qkv = jnp.concatenate(
        [jnp.concatenate(bq, axis=1),
         jnp.concatenate(bk_, axis=1),
         jnp.concatenate(bv, axis=1)], axis=1)            # (1, 96)

    # f32 compute to match the f32 PyTorch module; batch_blocks=1 at tiny shapes.
    out = heads_forward(x, w_qkv, b_qkv, num_heads=NH,
                        batch_blocks=1, compute_dtype=None)
    jax.block_until_ready(out)
    assert out.shape == (B, T, E)

    # Each head's lane-slice must match the original single-Head forward.
    for h in range(NH):
        ref_h = reference_single_head(x, wq[h], wk_[h], wv[h], bq[h], bk_[h], bv[h])
        got_h = out[..., h * H:(h + 1) * H]
        assert jnp.allclose(got_h, ref_h, atol=1e-4, rtol=1e-4), (
            h, float(jnp.max(jnp.abs(got_h - ref_h))))

    print("KERNEL_OK")
</pallas_src>

<mosaic_0001>
module attributes {stable_mosaic.version = 11 : i64} {
  func.func @fused_heads_kernel(%arg0: i32, %arg1: memref<16x32xf32, #tpu.memory_space<vmem>>, %arg2: memref<32x96xf32, #tpu.memory_space<vmem>>, %arg3: memref<1x96xf32, #tpu.memory_space<vmem>>, %arg4: memref<16x32xf32, #tpu.memory_space<vmem>>) attributes {dimension_semantics = [#tpu.dimension_semantics<parallel>], iteration_bounds = array<i64: 1>, scalar_prefetch = 0 : i64, scratch_operands = 0 : i64, tpu.core_type = #tpu.core_type<tc>, window_params = [{transform_indices = @transform_0, window_bounds = array<i64: 16, 32>}, {pipeline_mode = #tpu.pipeline_mode<synchronous>, transform_indices = @transform_1, window_bounds = array<i64: 32, 96>}, {pipeline_mode = #tpu.pipeline_mode<synchronous>, transform_indices = @transform_2, window_bounds = array<i64: 1, 96>}, {transform_indices = @transform_3, window_bounds = array<i64: 16, 32>}]} {
    %c0 = arith.constant 0 : index
    %c0_0 = arith.constant 0 : index
    %0 = vector.load %arg1[%c0, %c0_0] : memref<16x32xf32, #tpu.memory_space<vmem>>, vector<16x32xf32>
    %c0_1 = arith.constant 0 : index
    %c0_2 = arith.constant 0 : index
    %1 = vector.load %arg2[%c0_1, %c0_2] : memref<32x96xf32, #tpu.memory_space<vmem>>, vector<32x96xf32>
    %cst = arith.constant dense<0.000000e+00> : vector<16x96xf32>
    %2 = tpu.matmul %0, %1, %cst {dimension_numbers = #tpu.dot_dimension_numbers<[1], [0], [0], [1], [0, 0, 1, 1], [], []>} : vector<16x32xf32>, vector<32x96xf32>, vector<16x96xf32> -> vector<16x96xf32>
    %c0_3 = arith.constant 0 : index
    %c0_4 = arith.constant 0 : index
    %3 = vector.load %arg3[%c0_3, %c0_4] : memref<1x96xf32, #tpu.memory_space<vmem>>, vector<1x96xf32>
    %4 = vector.broadcast %3 : vector<1x96xf32> to vector<16x96xf32>
    %5 = arith.addf %2, %4 : vector<16x96xf32>
    %6 = vector.extract_strided_slice %5 {offsets = [0, 0], sizes = [16, 32], strides = [1, 1]} : vector<16x96xf32> to vector<16x32xf32>
    %cst_5 = arith.constant 0.353553385 : f32
    %7 = vector.broadcast %cst_5 : f32 to vector<16x32xf32>
    %8 = arith.mulf %6, %7 : vector<16x32xf32>
    %9 = vector.extract_strided_slice %5 {offsets = [0, 32], sizes = [16, 32], strides = [1, 1]} : vector<16x96xf32> to vector<16x32xf32>
    %10 = vector.extract_strided_slice %5 {offsets = [0, 64], sizes = [16, 32], strides = [1, 1]} : vector<16x96xf32> to vector<16x32xf32>
    %11 = tpu.iota {dimensions = array<i32: 0>} : vector<8x8xi32>
    %12 = tpu.iota {dimensions = array<i32: 1>} : vector<8x8xi32>
    %13 = arith.cmpi sgt, %12, %11 : vector<8x8xi32>
    %14 = vector.extract_strided_slice %8 {offsets = [0, 0], sizes = [16, 8], strides = [1, 1]} : vector<16x32xf32> to vector<16x8xf32>
    %15 = vector.shape_cast %14 : vector<16x8xf32> to vector<2x8x8xf32>
    %16 = vector.extract_strided_slice %9 {offsets = [0, 0], sizes = [16, 8], strides = [1, 1]} : vector<16x32xf32> to vector<16x8xf32>
    %17 = vector.shape_cast %16 : vector<16x8xf32> to vector<2x8x8xf32>
    %18 = vector.extract_strided_slice %10 {offsets = [0, 0], sizes = [16, 8], strides = [1, 1]} : vector<16x32xf32> to vector<16x8xf32>
    %19 = vector.shape_cast %18 : vector<16x8xf32> to vector<2x8x8xf32>
    "tpu.trace_start"() <{level = 10 : i32, message = "bqd,bkd->bqk"}> : () -> ()
    %cst_6 = arith.constant dense<0.000000e+00> : vector<2x8x8xf32>
    %20 = tpu.matmul %15, %17, %cst_6 {dimension_numbers = #tpu.dot_dimension_numbers<[2], [2], [1], [1], [0, 0, 0, 1, 1, 1], [0], [0]>} : vector<2x8x8xf32>, vector<2x8x8xf32>, vector<2x8x8xf32> -> vector<2x8x8xf32>
    %cst_7 = arith.constant -1.000000e+30 : f32
    "tpu.trace_stop"() : () -> ()
    %21 = vector.shape_cast %13 : vector<8x8xi1> to vector<1x8x8xi1>
    %22 = vector.broadcast %21 : vector<1x8x8xi1> to vector<2x8x8xi1>
    %23 = vector.broadcast %cst_7 : f32 to vector<2x8x8xf32>
    %24 = arith.select %22, %23, %20 : vector<2x8x8xi1>, vector<2x8x8xf32>
    %cst_8 = arith.constant dense<0xFF800000> : vector<2x8xf32>
    %25 = vector.multi_reduction <maximumf>, %24, %cst_8 [2] : vector<2x8x8xf32> to vector<2x8xf32>
    %26 = vector.shape_cast %25 : vector<2x8xf32> to vector<2x8x1xf32>
    %27 = vector.broadcast %26 : vector<2x8x1xf32> to vector<2x8x8xf32>
    %28 = arith.subf %24, %27 : vector<2x8x8xf32>
    %29 = math.exp %28 : vector<2x8x8xf32>
    %cst_9 = arith.constant dense<0.000000e+00> : vector<2x8xf32>
    %30 = vector.multi_reduction <add>, %29, %cst_9 [2] : vector<2x8x8xf32> to vector<2x8xf32>
    %31 = vector.shape_cast %30 : vector<2x8xf32> to vector<2x8x1xf32>
    %32 = tpu.reciprocal %31 {approx = true} : vector<2x8x1xf32> -> vector<2x8x1xf32>
    %33 = arith.mulf %31, %32 : vector<2x8x1xf32>
    %cst_10 = arith.constant 2.000000e+00 : f32
    %34 = vector.broadcast %cst_10 : f32 to vector<2x8x1xf32>
    %35 = arith.subf %34, %33 : vector<2x8x1xf32>
    %36 = arith.mulf %32, %35 : vector<2x8x1xf32>
    "tpu.trace_start"() <{level = 10 : i32, message = "bqk,bkd->bqd"}> : () -> ()
    %cst_11 = arith.constant dense<0.000000e+00> : vector<2x8x8xf32>
    %37 = tpu.matmul %29, %19, %cst_11 {dimension_numbers = #tpu.dot_dimension_numbers<[2], [1], [1], [2], [0, 0, 0, 1, 1, 2], [0], [0]>} : vector<2x8x8xf32>, vector<2x8x8xf32>, vector<2x8x8xf32> -> vector<2x8x8xf32>
    "tpu.trace_stop"() : () -> ()
    %38 = vector.broadcast %36 : vector<2x8x1xf32> to vector<2x8x8xf32>
    %39 = arith.mulf %37, %38 : vector<2x8x8xf32>
    %40 = vector.shape_cast %39 : vector<2x8x8xf32> to vector<16x8xf32>
    %41 = vector.extract_strided_slice %8 {offsets = [0, 8], sizes = [16, 8], strides = [1, 1]} : vector<16x32xf32> to vector<16x8xf32>
    %42 = vector.shape_cast %41 : vector<16x8xf32> to vector<2x8x8xf32>
    %43 = vector.extract_strided_slice %9 {offsets = [0, 8], sizes = [16, 8], strides = [1, 1]} : vector<16x32xf32> to vector<16x8xf32>
    %44 = vector.shape_cast %43 : vector<16x8xf32> to vector<2x8x8xf32>
    %45 = vector.extract_strided_slice %10 {offsets = [0, 8], sizes = [16, 8], strides = [1, 1]} : vector<16x32xf32> to vector<16x8xf32>
    %46 = vector.shape_cast %45 : vector<16x8xf32> to vector<2x8x8xf32>
    "tpu.trace_start"() <{level = 10 : i32, message = "bqd,bkd->bqk"}> : () -> ()
    %cst_12 = arith.constant dense<0.000000e+00> : vector<2x8x8xf32>
    %47 = tpu.matmul %42, %44, %cst_12 {dimension_numbers = #tpu.dot_dimension_numbers<[2], [2], [1], [1], [0, 0, 0, 1, 1, 1], [0], [0]>} : vector<2x8x8xf32>, vector<2x8x8xf32>, vector<2x8x8xf32> -> vector<2x8x8xf32>
    %cst_13 = arith.constant -1.000000e+30 : f32
    "tpu.trace_stop"() : () -> ()
    %48 = vector.shape_cast %13 : vector<8x8xi1> to vector<1x8x8xi1>
    %49 = vector.broadcast %48 : vector<1x8x8xi1> to vector<2x8x8xi1>
    %50 = vector.broadcast %cst_13 : f32 to vector<2x8x8xf32>
    %51 = arith.select %49, %50, %47 : vector<2x8x8xi1>, vector<2x8x8xf32>
    %cst_14 = arith.constant dense<0xFF800000> : vector<2x8xf32>
    %52 = vector.multi_reduction <maximumf>, %51, %cst_14 [2] : vector<2x8x8xf32> to vector<2x8xf32>
    %53 = vector.shape_cast %52 : vector<2x8xf32> to vector<2x8x1xf32>
    %54 = vector.broadcast %53 : vector<2x8x1xf32> to vector<2x8x8xf32>
    %55 = arith.subf %51, %54 : vector<2x8x8xf32>
    %56 = math.exp %55 : vector<2x8x8xf32>
    %cst_15 = arith.constant dense<0.000000e+00> : vector<2x8xf32>
    %57 = vector.multi_reduction <add>, %56, %cst_15 [2] : vector<2x8x8xf32> to vector<2x8xf32>
    %58 = vector.shape_cast %57 : vector<2x8xf32> to vector<2x8x1xf32>
    %59 = tpu.reciprocal %58 {approx = true} : vector<2x8x1xf32> -> vector<2x8x1xf32>
    %60 = arith.mulf %58, %59 : vector<2x8x1xf32>
    %cst_16 = arith.constant 2.000000e+00 : f32
    %61 = vector.broadcast %cst_16 : f32 to vector<2x8x1xf32>
    %62 = arith.subf %61, %60 : vector<2x8x1xf32>
    %63 = arith.mulf %59, %62 : vector<2x8x1xf32>
    "tpu.trace_start"() <{level = 10 : i32, message = "bqk,bkd->bqd"}> : () -> ()
    %cst_17 = arith.constant dense<0.000000e+00> : vector<2x8x8xf32>
    %64 = tpu.matmul %56, %46, %cst_17 {dimension_numbers = #tpu.dot_dimension_numbers<[2], [1], [1], [2], [0, 0, 0, 1, 1, 2], [0], [0]>} : vector<2x8x8xf32>, vector<2x8x8xf32>, vector<2x8x8xf32> -> vector<2x8x8xf32>
    "tpu.trace_stop"() : () -> ()
    %65 = vector.broadcast %63 : vector<2x8x1xf32> to vector<2x8x8xf32>
    %66 = arith.mulf %64, %65 : vector<2x8x8xf32>
    %67 = vector.shape_cast %66 : vector<2x8x8xf32> to vector<16x8xf32>
    %68 = vector.extract_strided_slice %8 {offsets = [0, 16], sizes = [16, 8], strides = [1, 1]} : vector<16x32xf32> to vector<16x8xf32>
    %69 = vector.shape_cast %68 : vector<16x8xf32> to vector<2x8x8xf32>
    %70 = vector.extract_strided_slice %9 {offsets = [0, 16], sizes = [16, 8], strides = [1, 1]} : vector<16x32xf32> to vector<16x8xf32>
    %71 = vector.shape_cast %70 : vector<16x8xf32> to vector<2x8x8xf32>
    %72 = vector.extract_strided_slice %10 {offsets = [0, 16], sizes = [16, 8], strides = [1, 1]} : vector<16x32xf32> to vector<16x8xf32>
    %73 = vector.shape_cast %72 : vector<16x8xf32> to vector<2x8x8xf32>
    "tpu.trace_start"() <{level = 10 : i32, message = "bqd,bkd->bqk"}> : () -> ()
    %cst_18 = arith.constant dense<0.000000e+00> : vector<2x8x8xf32>
    %74 = tpu.matmul %69, %71, %cst_18 {dimension_numbers = #tpu.dot_dimension_numbers<[2], [2], [1], [1], [0, 0, 0, 1, 1, 1], [0], [0]>} : vector<2x8x8xf32>, vector<2x8x8xf32>, vector<2x8x8xf32> -> vector<2x8x8xf32>
    %cst_19 = arith.constant -1.000000e+30 : f32
    "tpu.trace_stop"() : () -> ()
    %75 = vector.shape_cast %13 : vector<8x8xi1> to vector<1x8x8xi1>
    %76 = vector.broadcast %75 : vector<1x8x8xi1> to vector<2x8x8xi1>
    %77 = vector.broadcast %cst_19 : f32 to vector<2x8x8xf32>
    %78 = arith.select %76, %77, %74 : vector<2x8x8xi1>, vector<2x8x8xf32>
    %cst_20 = arith.constant dense<0xFF800000> : vector<2x8xf32>
    %79 = vector.multi_reduction <maximumf>, %78, %cst_20 [2] : vector<2x8x8xf32> to vector<2x8xf32>
    %80 = vector.shape_cast %79 : vector<2x8xf32> to vector<2x8x1xf32>
    %81 = vector.broadcast %80 : vector<2x8x1xf32> to vector<2x8x8xf32>
    %82 = arith.subf %78, %81 : vector<2x8x8xf32>
    %83 = math.exp %82 : vector<2x8x8xf32>
    %cst_21 = arith.constant dense<0.000000e+00> : vector<2x8xf32>
    %84 = vector.multi_reduction <add>, %83, %cst_21 [2] : vector<2x8x8xf32> to vector<2x8xf32>
    %85 = vector.shape_cast %84 : vector<2x8xf32> to vector<2x8x1xf32>
    %86 = tpu.reciprocal %85 {approx = true} : vector<2x8x1xf32> -> vector<2x8x1xf32>
    %87 = arith.mulf %85, %86 : vector<2x8x1xf32>
    %cst_22 = arith.constant 2.000000e+00 : f32
    %88 = vector.broadcast %cst_22 : f32 to vector<2x8x1xf32>
    %89 = arith.subf %88, %87 : vector<2x8x1xf32>
    %90 = arith.mulf %86, %89 : vector<2x8x1xf32>
    "tpu.trace_start"() <{level = 10 : i32, message = "bqk,bkd->bqd"}> : () -> ()
    %cst_23 = arith.constant dense<0.000000e+00> : vector<2x8x8xf32>
    %91 = tpu.matmul %83, %73, %cst_23 {dimension_numbers = #tpu.dot_dimension_numbers<[2], [1], [1], [2], [0, 0, 0, 1, 1, 2], [0], [0]>} : vector<2x8x8xf32>, vector<2x8x8xf32>, vector<2x8x8xf32> -> vector<2x8x8xf32>
    "tpu.trace_stop"() : () -> ()
    %92 = vector.broadcast %90 : vector<2x8x1xf32> to vector<2x8x8xf32>
    %93 = arith.mulf %91, %92 : vector<2x8x8xf32>
    %94 = vector.shape_cast %93 : vector<2x8x8xf32> to vector<16x8xf32>
    %95 = vector.extract_strided_slice %8 {offsets = [0, 24], sizes = [16, 8], strides = [1, 1]} : vector<16x32xf32> to vector<16x8xf32>
    %96 = vector.shape_cast %95 : vector<16x8xf32> to vector<2x8x8xf32>
    %97 = vector.extract_strided_slice %9 {offsets = [0, 24], sizes = [16, 8], strides = [1, 1]} : vector<16x32xf32> to vector<16x8xf32>
    %98 = vector.shape_cast %97 : vector<16x8xf32> to vector<2x8x8xf32>
    %99 = vector.extract_strided_slice %10 {offsets = [0, 24], sizes = [16, 8], strides = [1, 1]} : vector<16x32xf32> to vector<16x8xf32>
    %100 = vector.shape_cast %99 : vector<16x8xf32> to vector<2x8x8xf32>
    "tpu.trace_start"() <{level = 10 : i32, message = "bqd,bkd->bqk"}> : () -> ()
    %cst_24 = arith.constant dense<0.000000e+00> : vector<2x8x8xf32>
    %101 = tpu.matmul %96, %98, %cst_24 {dimension_numbers = #tpu.dot_dimension_numbers<[2], [2], [1], [1], [0, 0, 0, 1, 1, 1], [0], [0]>} : vector<2x8x8xf32>, vector<2x8x8xf32>, vector<2x8x8xf32> -> vector<2x8x8xf32>
    %cst_25 = arith.constant -1.000000e+30 : f32
    "tpu.trace_stop"() : () -> ()
    %102 = vector.shape_cast %13 : vector<8x8xi1> to vector<1x8x8xi1>
    %103 = vector.broadcast %102 : vector<1x8x8xi1> to vector<2x8x8xi1>
    %104 = vector.broadcast %cst_25 : f32 to vector<2x8x8xf32>
    %105 = arith.select %103, %104, %101 : vector<2x8x8xi1>, vector<2x8x8xf32>
    %cst_26 = arith.constant dense<0xFF800000> : vector<2x8xf32>
    %106 = vector.multi_reduction <maximumf>, %105, %cst_26 [2] : vector<2x8x8xf32> to vector<2x8xf32>
    %107 = vector.shape_cast %106 : vector<2x8xf32> to vector<2x8x1xf32>
    %108 = vector.broadcast %107 : vector<2x8x1xf32> to vector<2x8x8xf32>
    %109 = arith.subf %105, %108 : vector<2x8x8xf32>
    %110 = math.exp %109 : vector<2x8x8xf32>
    %cst_27 = arith.constant dense<0.000000e+00> : vector<2x8xf32>
    %111 = vector.multi_reduction <add>, %110, %cst_27 [2] : vector<2x8x8xf32> to vector<2x8xf32>
    %112 = vector.shape_cast %111 : vector<2x8xf32> to vector<2x8x1xf32>
    %113 = tpu.reciprocal %112 {approx = true} : vector<2x8x1xf32> -> vector<2x8x1xf32>
    %114 = arith.mulf %112, %113 : vector<2x8x1xf32>
    %cst_28 = arith.constant 2.000000e+00 : f32
    %115 = vector.broadcast %cst_28 : f32 to vector<2x8x1xf32>
    %116 = arith.subf %115, %114 : vector<2x8x1xf32>
    %117 = arith.mulf %113, %116 : vector<2x8x1xf32>
    "tpu.trace_start"() <{level = 10 : i32, message = "bqk,bkd->bqd"}> : () -> ()
    %cst_29 = arith.constant dense<0.000000e+00> : vector<2x8x8xf32>
    %118 = tpu.matmul %110, %100, %cst_29 {dimension_numbers = #tpu.dot_dimension_numbers<[2], [1], [1], [2], [0, 0, 0, 1, 1, 2], [0], [0]>} : vector<2x8x8xf32>, vector<2x8x8xf32>, vector<2x8x8xf32> -> vector<2x8x8xf32>
    "tpu.trace_stop"() : () -> ()
    %119 = vector.broadcast %117 : vector<2x8x1xf32> to vector<2x8x8xf32>
    %120 = arith.mulf %118, %119 : vector<2x8x8xf32>
    %121 = vector.shape_cast %120 : vector<2x8x8xf32> to vector<16x8xf32>
    %122 = tpu.concatenate %40, %67, %94, %121 in 1 : vector<16x8xf32>, vector<16x8xf32>, vector<16x8xf32>, vector<16x8xf32> -> vector<16x32xf32>
    %c0_30 = arith.constant 0 : index
    %c0_31 = arith.constant 0 : index
    %123 = vector.load %arg4[%c0_30, %c0_31] : memref<16x32xf32, #tpu.memory_space<vmem>>, vector<16x32xf32>
    tpu.vector_store %arg4[%c0_30, %c0_31], %122 {strides = array<i32>} : memref<16x32xf32, #tpu.memory_space<vmem>>, vector<16x32xf32>,
    return
  }
  func.func @transform_0(%arg0: i32) -> (i32, i32) {
    %c0_i32 = arith.constant 0 : i32
    %c0_i32_0 = arith.constant 0 : i32
    return %arg0, %c0_i32 : i32, i32
  }
  func.func @transform_1(%arg0: i32) -> (i32, i32) {
    %c0_i32 = arith.constant 0 : i32
    %c0_i32_0 = arith.constant 0 : i32
    %c0_i32_1 = arith.constant 0 : i32
    return %c0_i32, %c0_i32_0 : i32, i32
  }
  func.func @transform_2(%arg0: i32) -> (i32, i32) {
    %c0_i32 = arith.constant 0 : i32
    %c0_i32_0 = arith.constant 0 : i32
    %c0_i32_1 = arith.constant 0 : i32
    return %c0_i32, %c0_i32_0 : i32, i32
  }
  func.func @transform_3(%arg0: i32) -> (i32, i32) {
    %c0_i32 = arith.constant 0 : i32
    %c0_i32_0 = arith.constant 0 : i32
    return %arg0, %c0_i32 : i32, i32
  }
}

</mosaic_0001>

<llo_original>
// kernel: tpu_custom_call.1
$region0: #{tpu_custom_call.1}
  #allocation0 [shape = 'u32[]', space=smem, size = 0x4, offset = 0x4, fixed_abs, tag = 'smem constant byte address 0x4 - core index']
  #allocation1 [shape = 'u32[144,128]{1,0:T(1,128)}', space=vmem, size = 0x12000, scoped, tag = 'internal scratch']
  %s0 = inlined_call_operand.hbm [shape: f32[16,32], index: 0, kind: input, shape index: {}]
  %s1 = inlined_call_operand.hbm [shape: f32[32,96], index: 1, kind: input, shape index: {}]
  %s2 = inlined_call_operand.vmem [shape: f32[1,96], index: 2, kind: input, shape index: {}]
  %s3 = inlined_call_operand.hbm [shape: f32[16,32], index: 3, kind: output, shape index: {}]
  %s4 = sld [smem:[#allocation0]]
  $region30: #{tpu_custom_call.1} parent=0
    _
  %s6 = ssub.s32 1, %s4
  %s7 = scalar_select 0, %s6, %s4
  $region1: #{tpu_custom_call.1} parent=0
    #allocation2 [shape = 'u8[8192]{0}', space=vmem, size = 0x2000, scoped, tag = 'input window, operand 0, single buffered']
    #allocation3 [shape = 's32[1]{0}', space=sflag, size = 0x4, scoped, tag = 'scoped memory for tpu_custom_call.1']
    #allocation4 [shape = 's32[1]{0}', space=sflag, size = 0x4, scoped, tag = 'scoped memory for tpu_custom_call.1']
    #allocation5 [shape = 'u8[16384]{0}', space=vmem, size = 0x4000, scoped, tag = 'input window, operand 1, single buffered']
    #allocation6 [shape = 's32[1]{0}', space=sflag, size = 0x4, scoped, tag = 'scoped memory for tpu_custom_call.1']
    #allocation7 [shape = 'u8[8192]{0}', space=vmem, size = 0x2000, scoped, tag = 'output window, operand 0, single buffered']
    %8 = vsyncpa [#allocation3], 0
    %9 = vsyncpa [#allocation6], 0
    %10 = vsyncpa [#allocation4], 0
    // Predicated region
    $region2: #{tpu_custom_call.1} parent=1 // pred_check
      _
    $region3: #{tpu_custom_call.1} parent=1 // pred_check_branch
      %12 = sbr.rel (0) target = $region5
    $region4: #{tpu_custom_call.1} parent=1 // pred_region
      %s14 = ssub.s32 256, 256
      %15 = vsyncadd [#allocation3], %s14
      %s16 = sshll.u32 [#allocation2], 4
      %s17 = int_to_ptr.vmem [resolvable:$true] %s16
      %22 = dma.hbm_to_vmem [thread:$0]  %s0, 256, %s17, [#allocation3], 128, 128, 8
    $region5: #{tpu_custom_call.1} parent=1 // pred_fallthru
      _
    // Predicated region
    $region6: #{tpu_custom_call.1} parent=1 // pred_check
      _
    $region7: #{tpu_custom_call.1} parent=1 // pred_check_branch
      %24 = sbr.rel (0) target = $region9
    $region8: #{tpu_custom_call.1} parent=1 // pred_region
      %s26 = ssub.s32 512, 512
      %27 = vsyncadd [#allocation6], %s26
      %s28 = sshll.u32 [#allocation5], 4
      %s29 = int_to_ptr.vmem [resolvable:$true] %s28
      %34 = dma.hbm_to_vmem [thread:$0]  %s1, 512, %s29, [#allocation6], 128, 128, 8
    $region9: #{tpu_custom_call.1} parent=1 // pred_fallthru
      _
    // Predicated region
    $region10: #{tpu_custom_call.1} parent=1 // pred_check
      _
    $region11: #{tpu_custom_call.1} parent=1 // pred_check_branch
      %36 = sbr.rel (0) target = $region13
    $region12: #{tpu_custom_call.1} parent=1 // pred_region
      _
    $region13: #{tpu_custom_call.1} parent=1 // pred_fallthru
      _
    // Predicated region
    $region14: #{tpu_custom_call.1} parent=1 // pred_check
      _
    $region15: #{tpu_custom_call.1} parent=1 // pred_check_branch
      %38 = sbr.rel (0) target = $region17
    $region16: #{tpu_custom_call.1} parent=1 // pred_region
      %39 = dma.done [#allocation3], 256
    $region17: #{tpu_custom_call.1} parent=1 // pred_fallthru
      _
    // Predicated region
    $region18: #{tpu_custom_call.1} parent=1 // pred_check
      _
    $region19: #{tpu_custom_call.1} parent=1 // pred_check_branch
      %41 = sbr.rel (0) target = $region21
    $region20: #{tpu_custom_call.1} parent=1 // pred_region
      %42 = dma.done [#allocation6], 512
    $region21: #{tpu_custom_call.1} parent=1 // pred_fallthru
      _
    %v43 = vld [vmem:[#allocation2] sm:$0xff]
    %v44 = vld [vmem:[#allocation2 + $0x8] sm:$0xff]
    %v45 = vld [vmem:[#allocation5] sm:$0xff]
    %v46 = vld [vmem:[#allocation5 + $0x8] sm:$0xff]
    %v47 = vld [vmem:[#allocation5 + $0x10] sm:$0xff]
    %v48 = vld [vmem:[#allocation5 + $0x18] sm:$0xff]
    %v49 = vld [vmem:[%s2] sm:$0x1]
    %v51 = vlaneseq
    %v52 = vshrl.u32 %v51, 7
    %v53 = vsub.s32 0, %v52
    %v54 = vrot.slane %v49, %v53
    %vm56 = vcmask 261120
    %v58 = vsel %vm56, %v43, 0
    %v61 = vsel %vm56, %v44, 0
    %63 = vmatprep.subr.mxu0 0.0
    %64 = vmatpush1.msra.mxu0 0.0
    %65 = vmatprep.subr.mxu0 0.0
    %66 = vmatpush1.msra.mxu0 0.0
    %67 = vmatprep.subr.mxu0 0.0
    %68 = vmatpush1.msra.mxu0 0.0
    %69 = vmatprep.subr.mxu0 0.0
    %70 = vmatpush1.msra.mxu0 0.0
    %71 = vmatprep.subr.mxu0 0.0
    %72 = vmatpush1.msra.mxu0 0.0
    %73 = vmatprep.subr.mxu0 0.0
    %74 = vmatpush1.msra.mxu0 0.0
    %75 = vmatprep.subr.mxu0 0.0
    %76 = vmatpush1.msra.mxu0 0.0
    %77 = vmatprep.subr.mxu0 0.0
    %78 = vmatpush1.msra.mxu0 0.0
    %79 = vmatprep.subr.mxu0 0.0
    %80 = vmatpush1.msra.mxu0 0.0
    %81 = vmatprep.subr.mxu0 0.0
    %82 = vmatpush1.msra.mxu0 0.0
    %83 = vmatprep.subr.mxu0 0.0
    %84 = vmatpush1.msra.mxu0 0.0
    %85 = vmatprep.subr.mxu0 0.0
    %86 = vmatpush1.msra.mxu0 0.0
    %87 = vmatprep.subr.mxu0 0.0
    %88 = vmatpush1.msra.mxu0 %v48
    %89 = vmatprep.subr.mxu0 0.0
    %90 = vmatpush1.msra.mxu0 %v47
    %91 = vmatprep.subr.mxu0 0.0
    %92 = vmatpush1.msra.mxu0 %v46
    %93 = vmatprep.subr.mxu0 0.0
    %94 = vmatpush1.msra.mxu0 %v45
    %95 = vmatprep.subr.mxu0 0.0
    %96 = vmatpush2.msra.mxu0 0.0
    %97 = vmatprep.subr.mxu0 0.0
    %98 = vmatpush2.msra.mxu0 0.0
    %99 = vmatprep.subr.mxu0 0.0
    %100 = vmatpush2.msra.mxu0 0.0
    %101 = vmatprep.subr.mxu0 0.0
    %102 = vmatpush2.msra.mxu0 0.0
    %103 = vmatprep.subr.mxu0 0.0
    %104 = vmatpush2.msra.mxu0 0.0
    %105 = vmatprep.subr.mxu0 0.0
    %106 = vmatpush2.msra.mxu0 0.0
    %107 = vmatprep.subr.mxu0 0.0
    %108 = vmatpush2.msra.mxu0 0.0
    %109 = vmatprep.subr.mxu0 0.0
    %110 = vmatpush2.msra.mxu0 0.0
    %111 = vmatprep.subr.mxu0 0.0
    %112 = vmatpush2.msra.mxu0 0.0
    %113 = vmatprep.subr.mxu0 0.0
    %114 = vmatpush2.msra.mxu0 0.0
    %115 = vmatprep.subr.mxu0 0.0
    %116 = vmatpush2.msra.mxu0 0.0
    %117 = vmatprep.subr.mxu0 0.0
    %118 = vmatpush2.msra.mxu0 0.0
    %119 = vmatprep.subr.mxu0 0.0
    %120 = vmatpush2.msra.mxu0 0.0
    %121 = vmatprep.subr.mxu0 0.0
    %122 = vmatpush2.msra.mxu0 0.0
    %123 = vmatprep.subr.mxu0 0.0
    %124 = vmatpush2.msra.mxu0 0.0
    %125 = vmatprep.subr.mxu0 0.0
    %126 = vmatpush2.msra.mxu0 0.0
    %127 = vmatprep.mubr.f32.mxu0 0.0
    %128 = vmatmul.mubr.f32.gmra.mxu0 %v58
    %v129 = vpop.f32.mrf.mxu0
    %v130 = vadd.f32 %v54, %v129
    %v131 = vpop.f32.mrf.mxu0
    %132 = vmatprep.mubr.f32.mxu0 0.0
    %133 = vmatmul.mubr.f32.gmra.mxu0 %v61
    %v134 = vpop.f32.mrf.mxu0
    %v135 = vadd.f32 %v54, %v134
    %v136 = vpop.f32.mrf.mxu0
    %137 = vdwg.mxu0
    %v138 = vmul.f32 %v130, 0.35355338
    %v139 = vmul.f32 %v135, 0.35355338
    %v140 = vlaneseq
    %v141 = vshrl.u32 %v140, 7
    %v142 = vlaneseq
    %v143 = vand.u32 %v142, 127
    %vm144 = vcmp.gt.s32.totalorder %v143, %v141
    %146 = vrot.lane.b32.xlu0 %v130, 96
    %v147 = vpop.permute.xlu0 %146
    %vm148 = vcmask 64512
    %v150 = vsel %vm148, %v138, 0
    %v152 = vsel %vm148, %v147, 0
    %154 = vmatprep.subr.mxu0 0.0
    %155 = vmatpush1.xpose.msra.mxu0 0.0
    %156 = vmatprep.subr.mxu0 0.0
    %157 = vmatpush1.xpose.msra.mxu0 0.0
    %158 = vmatprep.subr.mxu0 0.0
    %159 = vmatpush1.xpose.msra.mxu0 0.0
    %160 = vmatprep.subr.mxu0 0.0
    %161 = vmatpush1.xpose.msra.mxu0 0.0
    %162 = vmatprep.subr.mxu0 0.0
    %163 = vmatpush1.xpose.msra.mxu0 0.0
    %164 = vmatprep.subr.mxu0 0.0
    %165 = vmatpush1.xpose.msra.mxu0 0.0
    %166 = vmatprep.subr.mxu0 0.0
    %167 = vmatpush1.xpose.msra.mxu0 0.0
    %168 = vmatprep.subr.mxu0 0.0
    %169 = vmatpush1.xpose.msra.mxu0 0.0
    %170 = vmatprep.subr.mxu0 0.0
    %171 = vmatpush1.xpose.msra.mxu0 0.0
    %172 = vmatprep.subr.mxu0 0.0
    %173 = vmatpush1.xpose.msra.mxu0 0.0
    %174 = vmatprep.subr.mxu0 0.0
    %175 = vmatpush1.xpose.msra.mxu0 0.0
    %176 = vmatprep.subr.mxu0 0.0
    %177 = vmatpush1.xpose.msra.mxu0 0.0
    %178 = vmatprep.subr.mxu0 0.0
    %179 = vmatpush1.xpose.msra.mxu0 0.0
    %180 = vmatprep.subr.mxu0 0.0
    %181 = vmatpush1.xpose.msra.mxu0 0.0
    %182 = vmatprep.subr.mxu0 0.0
    %183 = vmatpush1.xpose.msra.mxu0 0.0
    %184 = vmatprep.subr.mxu0 0.0
    %185 = vmatpush1.xpose.msra.mxu0 %v152
    %186 = vmatprep.subr.mxu0 0.0
    %187 = vmatpush2.xpose.msra.mxu0 0.0
    %188 = vmatprep.subr.mxu0 0.0
    %189 = vmatpush2.xpose.msra.mxu0 0.0
    %190 = vmatprep.subr.mxu0 0.0
    %191 = vmatpush2.xpose.msra.mxu0 0.0
    %192 = vmatprep.subr.mxu0 0.0
    %193 = vmatpush2.xpose.msra.mxu0 0.0
    %194 = vmatprep.subr.mxu0 0.0
    %195 = vmatpush2.xpose.msra.mxu0 0.0
    %196 = vmatprep.subr.mxu0 0.0
    %197 = vmatpush2.xpose.msra.mxu0 0.0
    %198 = vmatprep.subr.mxu0 0.0
    %199 = vmatpush2.xpose.msra.mxu0 0.0
    %200 = vmatprep.subr.mxu0 0.0
    %201 = vmatpush2.xpose.msra.mxu0 0.0
    %202 = vmatprep.subr.mxu0 0.0
    %203 = vmatpush2.xpose.msra.mxu0 0.0
    %204 = vmatprep.subr.mxu0 0.0
    %205 = vmatpush2.xpose.msra.mxu0 0.0
    %206 = vmatprep.subr.mxu0 0.0
    %207 = vmatpush2.xpose.msra.mxu0 0.0
    %208 = vmatprep.subr.mxu0 0.0
    %209 = vmatpush2.xpose.msra.mxu0 0.0
    %210 = vmatprep.subr.mxu0 0.0
    %211 = vmatpush2.xpose.msra.mxu0 0.0
    %212 = vmatprep.subr.mxu0 0.0
    %213 = vmatpush2.xpose.msra.mxu0 0.0
    %214 = vmatprep.subr.mxu0 0.0
    %215 = vmatpush2.xpose.msra.mxu0 0.0
    %216 = vmatprep.subr.mxu0 0.0
    %217 = vmatpush2.xpose.msra.mxu0 0.0
    %218 = vmatprep.mubr.f32.mxu0 0.0
    %219 = vmatmul.mubr.f32.gmra.mxu0 %v150
    %v220 = vpop.f32.mrf.mxu0
    %v221 = vadd.f32 0.0, %v220
    %v222 = vpop.f32.mrf.mxu0
    %223 = vdwg.mxu0
    %225 = vrot.lane.b32.xlu0 %v135, 96
    %v226 = vpop.permute.xlu0 %225
    %v228 = vsel %vm148, %v139, 0
    %v230 = vsel %vm148, %v226, 0
    %232 = vmatprep.subr.mxu0 0.0
    %233 = vmatpush1.xpose.msra.mxu0 0.0
    %234 = vmatprep.subr.mxu0 0.0
    %235 = vmatpush1.xpose.msra.mxu0 0.0
    %236 = vmatprep.subr.mxu0 0.0
    %237 = vmatpush1.xpose.msra.mxu0 0.0
    %238 = vmatprep.subr.mxu0 0.0
    %239 = vmatpush1.xpose.msra.mxu0 0.0
    %240 = vmatprep.subr.mxu0 0.0
    %241 = vmatpush1.xpose.msra.mxu0 0.0
    %242 = vmatprep.subr.mxu0 0.0
    %243 = vmatpush1.xpose.msra.mxu0 0.0
    %244 = vmatprep.subr.mxu0 0.0
    %245 = vmatpush1.xpose.msra.mxu0 0.0
    %246 = vmatprep.subr.mxu0 0.0
    %247 = vmatpush1.xpose.msra.mxu0 0.0
    %248 = vmatprep.subr.mxu0 0.0
    %249 = vmatpush1.xpose.msra.mxu0 0.0
    %250 = vmatprep.subr.mxu0 0.0
    %251 = vmatpush1.xpose.msra.mxu0 0.0
    %252 = vmatprep.subr.mxu0 0.0
    %253 = vmatpush1.xpose.msra.mxu0 0.0
    %254 = vmatprep.subr.mxu0 0.0
    %255 = vmatpush1.xpose.msra.mxu0 0.0
    %256 = vmatprep.subr.mxu0 0.0
    %257 = vmatpush1.xpose.msra.mxu0 0.0
    %258 = vmatprep.subr.mxu0 0.0
    %259 = vmatpush1.xpose.msra.mxu0 0.0
    %260 = vmatprep.subr.mxu0 0.0
    %261 = vmatpush1.xpose.msra.mxu0 0.0
    %262 = vmatprep.subr.mxu0 0.0
    %263 = vmatpush1.xpose.msra.mxu0 %v230
    %264 = vmatprep.subr.mxu0 0.0
    %265 = vmatpush2.xpose.msra.mxu0 0.0
    %266 = vmatprep.subr.mxu0 0.0
    %267 = vmatpush2.xpose.msra.mxu0 0.0
    %268 = vmatprep.subr.mxu0 0.0
    %269 = vmatpush2.xpose.msra.mxu0 0.0
    %270 = vmatprep.subr.mxu0 0.0
    %271 = vmatpush2.xpose.msra.mxu0 0.0
    %272 = vmatprep.subr.mxu0 0.0
    %273 = vmatpush2.xpose.msra.mxu0 0.0
    %274 = vmatprep.subr.mxu0 0.0
    %275 = vmatpush2.xpose.msra.mxu0 0.0
    %276 = vmatprep.subr.mxu0 0.0
    %277 = vmatpush2.xpose.msra.mxu0 0.0
    %278 = vmatprep.subr.mxu0 0.0
    %279 = vmatpush2.xpose.msra.mxu0 0.0
    %280 = vmatprep.subr.mxu0 0.0
    %281 = vmatpush2.xpose.msra.mxu0 0.0
    %282 = vmatprep.subr.mxu0 0.0
    %283 = vmatpush2.xpose.msra.mxu0 0.0
    %284 = vmatprep.subr.mxu0 0.0
    %285 = vmatpush2.xpose.msra.mxu0 0.0
    %286 = vmatprep.subr.mxu0 0.0
    %287 = vmatpush2.xpose.msra.mxu0 0.0
    %288 = vmatprep.subr.mxu0 0.0
    %289 = vmatpush2.xpose.msra.mxu0 0.0
    %290 = vmatprep.subr.mxu0 0.0
    %291 = vmatpush2.xpose.msra.mxu0 0.0
    %292 = vmatprep.subr.mxu0 0.0
    %293 = vmatpush2.xpose.msra.mxu0 0.0
    %294 = vmatprep.subr.mxu0 0.0
    %295 = vmatpush2.xpose.msra.mxu0 0.0
    %296 = vmatprep.mubr.f32.mxu0 0.0
    %297 = vmatmul.mubr.f32.gmra.mxu0 %v228
    %v298 = vpop.f32.mrf.mxu0
    %v299 = vadd.f32 0.0, %v298
    %v300 = vpop.f32.mrf.mxu0
    %301 = vdwg.mxu0
    %v302 = vsel %vm144, 1, 0
    %vm303 = vcmp.eq.s32.totalorder %v302, 1
    %v304 = vsel %vm303, -1e+30, %v221
    %v305 = vsel %vm303, -1e+30, %v299
    %v306 = vsel %vm148, %v304, -inf
    %307 = vmax.xlane.f32.xlu0 %v306
    %v308 = vpop.xlane.xlu0 %307
    %v309 = vsel %vm148, %v305, -inf
    %310 = vmax.xlane.f32.xlu0 %v309
    %v311 = vpop.xlane.xlu0 %310
    %v312 = vsub.f32 %v304, %v308
    %v313 = vsub.f32 %v305, %v311
    %v314 = vmul.f32 %v312, 1.442695
    %v315 = vpow.pop %v314
    %v316 = vmul.f32 %v313, 1.442695
    %v317 = vpow.pop %v316
    %v318 = vsel %vm148, %v315, 0.0
    %319 = vadd.xlane.f32.xlu0 %v318
    %v320 = vpop.xlane.xlu0 %319
    %v321 = vsel %vm148, %v317, 0.0
    %322 = vadd.xlane.f32.xlu0 %v321
    %v323 = vpop.xlane.xlu0 %322
    %v324 = vrcp.pop %v320
    %v325 = vrcp.pop %v323
    %v326 = vmul.f32 %v320, %v324
    %v327 = vmul.f32 %v323, %v325
    %v328 = vsub.f32 2.0, %v326
    %v329 = vsub.f32 2.0, %v327
    %v330 = vmul.f32 %v324, %v328
    %v331 = vmul.f32 %v325, %v329
    %332 = vrot.lane.b32.xlu0 %v130, 64
    %v333 = vpop.permute.xlu0 %332
    %v336 = vsel %vm148, %v315, 0
    %338 = vmatprep.subr.mxu0 0.0
    %339 = vmatpush1.msra.mxu0 0.0
    %340 = vmatprep.subr.mxu0 0.0
    %341 = vmatpush1.msra.mxu0 0.0
    %342 = vmatprep.subr.mxu0 0.0
    %343 = vmatpush1.msra.mxu0 0.0
    %344 = vmatprep.subr.mxu0 0.0
    %345 = vmatpush1.msra.mxu0 0.0
    %346 = vmatprep.subr.mxu0 0.0
    %347 = vmatpush1.msra.mxu0 0.0
    %348 = vmatprep.subr.mxu0 0.0
    %349 = vmatpush1.msra.mxu0 0.0
    %350 = vmatprep.subr.mxu0 0.0
    %351 = vmatpush1.msra.mxu0 0.0
    %352 = vmatprep.subr.mxu0 0.0
    %353 = vmatpush1.msra.mxu0 0.0
    %354 = vmatprep.subr.mxu0 0.0
    %355 = vmatpush1.msra.mxu0 0.0
    %356 = vmatprep.subr.mxu0 0.0
    %357 = vmatpush1.msra.mxu0 0.0
    %358 = vmatprep.subr.mxu0 0.0
    %359 = vmatpush1.msra.mxu0 0.0
    %360 = vmatprep.subr.mxu0 0.0
    %361 = vmatpush1.msra.mxu0 0.0
    %362 = vmatprep.subr.mxu0 0.0
    %363 = vmatpush1.msra.mxu0 0.0
    %364 = vmatprep.subr.mxu0 0.0
    %365 = vmatpush1.msra.mxu0 0.0
    %366 = vmatprep.subr.mxu0 0.0
    %367 = vmatpush1.msra.mxu0 0.0
    %368 = vmatprep.subr.mxu0 0.0
    %369 = vmatpush1.msra.mxu0 %v333
    %370 = vmatprep.subr.mxu0 0.0
    %371 = vmatpush2.msra.mxu0 0.0
    %372 = vmatprep.subr.mxu0 0.0
    %373 = vmatpush2.msra.mxu0 0.0
    %374 = vmatprep.subr.mxu0 0.0
    %375 = vmatpush2.msra.mxu0 0.0
    %376 = vmatprep.subr.mxu0 0.0
    %377 = vmatpush2.msra.mxu0 0.0
    %378 = vmatprep.subr.mxu0 0.0
    %379 = vmatpush2.msra.mxu0 0.0
    %380 = vmatprep.subr.mxu0 0.0
    %381 = vmatpush2.msra.mxu0 0.0
    %382 = vmatprep.subr.mxu0 0.0
    %383 = vmatpush2.msra.mxu0 0.0
    %384 = vmatprep.subr.mxu0 0.0
    %385 = vmatpush2.msra.mxu0 0.0
    %386 = vmatprep.subr.mxu0 0.0
    %387 = vmatpush2.msra.mxu0 0.0
    %388 = vmatprep.subr.mxu0 0.0
    %389 = vmatpush2.msra.mxu0 0.0
    %390 = vmatprep.subr.mxu0 0.0
    %391 = vmatpush2.msra.mxu0 0.0
    %392 = vmatprep.subr.mxu0 0.0
    %393 = vmatpush2.msra.mxu0 0.0
    %394 = vmatprep.subr.mxu0 0.0
    %395 = vmatpush2.msra.mxu0 0.0
    %396 = vmatprep.subr.mxu0 0.0
    %397 = vmatpush2.msra.mxu0 0.0
    %398 = vmatprep.subr.mxu0 0.0
    %399 = vmatpush2.msra.mxu0 0.0
    %400 = vmatprep.subr.mxu0 0.0
    %401 = vmatpush2.msra.mxu0 0.0
    %402 = vmatprep.mubr.f32.mxu0 0.0
    %403 = vmatmul.mubr.f32.gmra.mxu0 %v336
    %v404 = vpop.f32.mrf.mxu0
    %v405 = vadd.f32 0.0, %v404
    %v406 = vpop.f32.mrf.mxu0
    %407 = vdwg.mxu0
    %408 = vrot.lane.b32.xlu0 %v135, 64
    %v409 = vpop.permute.xlu0 %408
    %v412 = vsel %vm148, %v317, 0
    %414 = vmatprep.subr.mxu0 0.0
    %415 = vmatpush1.msra.mxu0 0.0
    %416 = vmatprep.subr.mxu0 0.0
    %417 = vmatpush1.msra.mxu0 0.0
    %418 = vmatprep.subr.mxu0 0.0
    %419 = vmatpush1.msra.mxu0 0.0
    %420 = vmatprep.subr.mxu0 0.0
    %421 = vmatpush1.msra.mxu0 0.0
    %422 = vmatprep.subr.mxu0 0.0
    %423 = vmatpush1.msra.mxu0 0.0
    %424 = vmatprep.subr.mxu0 0.0
    %425 = vmatpush1.msra.mxu0 0.0
    %426 = vmatprep.subr.mxu0 0.0
    %427 = vmatpush1.msra.mxu0 0.0
    %428 = vmatprep.subr.mxu0 0.0
    %429 = vmatpush1.msra.mxu0 0.0
    %430 = vmatprep.subr.mxu0 0.0
    %431 = vmatpush1.msra.mxu0 0.0
    %432 = vmatprep.subr.mxu0 0.0
    %433 = vmatpush1.msra.mxu0 0.0
    %434 = vmatprep.subr.mxu0 0.0
    %435 = vmatpush1.msra.mxu0 0.0
    %436 = vmatprep.subr.mxu0 0.0
    %437 = vmatpush1.msra.mxu0 0.0
    %438 = vmatprep.subr.mxu0 0.0
    %439 = vmatpush1.msra.mxu0 0.0
    %440 = vmatprep.subr.mxu0 0.0
    %441 = vmatpush1.msra.mxu0 0.0
    %442 = vmatprep.subr.mxu0 0.0
    %443 = vmatpush1.msra.mxu0 0.0
    %444 = vmatprep.subr.mxu0 0.0
    %445 = vmatpush1.msra.mxu0 %v409
    %446 = vmatprep.subr.mxu0 0.0
    %447 = vmatpush2.msra.mxu0 0.0
    %448 = vmatprep.subr.mxu0 0.0
    %449 = vmatpush2.msra.mxu0 0.0
    %450 = vmatprep.subr.mxu0 0.0
    %451 = vmatpush2.msra.mxu0 0.0
    %452 = vmatprep.subr.mxu0 0.0
    %453 = vmatpush2.msra.mxu0 0.0
    %454 = vmatprep.subr.mxu0 0.0
    %455 = vmatpush2.msra.mxu0 0.0
    %456 = vmatprep.subr.mxu0 0.0
    %457 = vmatpush2.msra.mxu0 0.0
    %458 = vmatprep.subr.mxu0 0.0
    %459 = vmatpush2.msra.mxu0 0.0
    %460 = vmatprep.subr.mxu0 0.0
    %461 = vmatpush2.msra.mxu0 0.0
    %462 = vmatprep.subr.mxu0 0.0
    %463 = vmatpush2.msra.mxu0 0.0
    %464 = vmatprep.subr.mxu0 0.0
    %465 = vmatpush2.msra.mxu0 0.0
    %466 = vmatprep.subr.mxu0 0.0
    %467 = vmatpush2.msra.mxu0 0.0
    %468 = vmatprep.subr.mxu0 0.0
    %469 = vmatpush2.msra.mxu0 0.0
    %470 = vmatprep.subr.mxu0 0.0
    %471 = vmatpush2.msra.mxu0 0.0
    %472 = vmatprep.subr.mxu0 0.0
    %473 = vmatpush2.msra.mxu0 0.0
    %474 = vmatprep.subr.mxu0 0.0
    %475 = vmatpush2.msra.mxu0 0.0
    %476 = vmatprep.subr.mxu0 0.0
    %477 = vmatpush2.msra.mxu0 0.0
    %478 = vmatprep.mubr.f32.mxu0 0.0
    %479 = vmatmul.mubr.f32.gmra.mxu0 %v412
    %v480 = vpop.f32.mrf.mxu0
    %v481 = vadd.f32 0.0, %v480
    %v482 = vpop.f32.mrf.mxu0
    %483 = vdwg.mxu0
    %v484 = vmul.f32 %v405, %v330
    %v485 = vmul.f32 %v481, %v331
    %486 = vrot.lane.b32.xlu0 %v138, 120
    %v487 = vpop.permute.xlu0 %486
    %488 = vrot.lane.b32.xlu0 %v130, 88
    %v489 = vpop.permute.xlu0 %488
    %v490 = vsel %vm148, %v487, 0
    %v492 = vsel %vm148, %v489, 0
    %494 = vmatprep.subr.mxu0 0.0
    %495 = vmatpush1.xpose.msra.mxu0 0.0
    %496 = vmatprep.subr.mxu0 0.0
    %497 = vmatpush1.xpose.msra.mxu0 0.0
    %498 = vmatprep.subr.mxu0 0.0
    %499 = vmatpush1.xpose.msra.mxu0 0.0
    %500 = vmatprep.subr.mxu0 0.0
    %501 = vmatpush1.xpose.msra.mxu0 0.0
    %502 = vmatprep.subr.mxu0 0.0
    %503 = vmatpush1.xpose.msra.mxu0 0.0
    %504 = vmatprep.subr.mxu0 0.0
    %505 = vmatpush1.xpose.msra.mxu0 0.0
    %506 = vmatprep.subr.mxu0 0.0
    %507 = vmatpush1.xpose.msra.mxu0 0.0
    %508 = vmatprep.subr.mxu0 0.0
    %509 = vmatpush1.xpose.msra.mxu0 0.0
    %510 = vmatprep.subr.mxu0 0.0
    %511 = vmatpush1.xpose.msra.mxu0 0.0
    %512 = vmatprep.subr.mxu0 0.0
    %513 = vmatpush1.xpose.msra.mxu0 0.0
    %514 = vmatprep.subr.mxu0 0.0
    %515 = vmatpush1.xpose.msra.mxu0 0.0
    %516 = vmatprep.subr.mxu0 0.0
    %517 = vmatpush1.xpose.msra.mxu0 0.0
    %518 = vmatprep.subr.mxu0 0.0
    %519 = vmatpush1.xpose.msra.mxu0 0.0
    %520 = vmatprep.subr.mxu0 0.0
    %521 = vmatpush1.xpose.msra.mxu0 0.0
    %522 = vmatprep.subr.mxu0 0.0
    %523 = vmatpush1.xpose.msra.mxu0 0.0
    %524 = vmatprep.subr.mxu0 0.0
    %525 = vmatpush1.xpose.msra.mxu0 %v492
    %526 = vmatprep.subr.mxu0 0.0
    %527 = vmatpush2.xpose.msra.mxu0 0.0
    %528 = vmatprep.subr.mxu0 0.0
    %529 = vmatpush2.xpose.msra.mxu0 0.0
    %530 = vmatprep.subr.mxu0 0.0
    %531 = vmatpush2.xpose.msra.mxu0 0.0
    %532 = vmatprep.subr.mxu0 0.0
    %533 = vmatpush2.xpose.msra.mxu0 0.0
    %534 = vmatprep.subr.mxu0 0.0
    %535 = vmatpush2.xpose.msra.mxu0 0.0
    %536 = vmatprep.subr.mxu0 0.0
    %537 = vmatpush2.xpose.msra.mxu0 0.0
    %538 = vmatprep.subr.mxu0 0.0
    %539 = vmatpush2.xpose.msra.mxu0 0.0
    %540 = vmatprep.subr.mxu0 0.0
    %541 = vmatpush2.xpose.msra.mxu0 0.0
    %542 = vmatprep.subr.mxu0 0.0
    %543 = vmatpush2.xpose.msra.mxu0 0.0
    %544 = vmatprep.subr.mxu0 0.0
    %545 = vmatpush2.xpose.msra.mxu0 0.0
    %546 = vmatprep.subr.mxu0 0.0
    %547 = vmatpush2.xpose.msra.mxu0 0.0
    %548 = vmatprep.subr.mxu0 0.0
    %549 = vmatpush2.xpose.msra.mxu0 0.0
    %550 = vmatprep.subr.mxu0 0.0
    %551 = vmatpush2.xpose.msra.mxu0 0.0
    %552 = vmatprep.subr.mxu0 0.0
    %553 = vmatpush2.xpose.msra.mxu0 0.0
    %554 = vmatprep.subr.mxu0 0.0
    %555 = vmatpush2.xpose.msra.mxu0 0.0
    %556 = vmatprep.subr.mxu0 0.0
    %557 = vmatpush2.xpose.msra.mxu0 0.0
    %558 = vmatprep.mubr.f32.mxu0 0.0
    %559 = vmatmul.mubr.f32.gmra.mxu0 %v490
    %v560 = vpop.f32.mrf.mxu0
    %v561 = vadd.f32 0.0, %v560
    %v562 = vpop.f32.mrf.mxu0
    %563 = vdwg.mxu0
    %564 = vrot.lane.b32.xlu0 %v139, 120
    %v565 = vpop.permute.xlu0 %564
    %566 = vrot.lane.b32.xlu0 %v135, 88
    %v567 = vpop.permute.xlu0 %566
    %v568 = vsel %vm148, %v565, 0
    %v570 = vsel %vm148, %v567, 0
    %572 = vmatprep.subr.mxu0 0.0
    %573 = vmatpush1.xpose.msra.mxu0 0.0
    %574 = vmatprep.subr.mxu0 0.0
    %575 = vmatpush1.xpose.msra.mxu0 0.0
    %576 = vmatprep.subr.mxu0 0.0
    %577 = vmatpush1.xpose.msra.mxu0 0.0
    %578 = vmatprep.subr.mxu0 0.0
    %579 = vmatpush1.xpose.msra.mxu0 0.0
    %580 = vmatprep.subr.mxu0 0.0
    %581 = vmatpush1.xpose.msra.mxu0 0.0
    %582 = vmatprep.subr.mxu0 0.0
    %583 = vmatpush1.xpose.msra.mxu0 0.0
    %584 = vmatprep.subr.mxu0 0.0
    %585 = vmatpush1.xpose.msra.mxu0 0.0
    %586 = vmatprep.subr.mxu0 0.0
    %587 = vmatpush1.xpose.msra.mxu0 0.0
    %588 = vmatprep.subr.mxu0 0.0
    %589 = vmatpush1.xpose.msra.mxu0 0.0
    %590 = vmatprep.subr.mxu0 0.0
    %591 = vmatpush1.xpose.msra.mxu0 0.0
    %592 = vmatprep.subr.mxu0 0.0
    %593 = vmatpush1.xpose.msra.mxu0 0.0
    %594 = vmatprep.subr.mxu0 0.0
    %595 = vmatpush1.xpose.msra.mxu0 0.0
    %596 = vmatprep.subr.mxu0 0.0
    %597 = vmatpush1.xpose.msra.mxu0 0.0
    %598 = vmatprep.subr.mxu0 0.0
    %599 = vmatpush1.xpose.msra.mxu0 0.0
    %600 = vmatprep.subr.mxu0 0.0
    %601 = vmatpush1.xpose.msra.mxu0 0.0
    %602 = vmatprep.subr.mxu0 0.0
    %603 = vmatpush1.xpose.msra.mxu0 %v570
    %604 = vmatprep.subr.mxu0 0.0
    %605 = vmatpush2.xpose.msra.mxu0 0.0
    %606 = vmatprep.subr.mxu0 0.0
    %607 = vmatpush2.xpose.msra.mxu0 0.0
    %608 = vmatprep.subr.mxu0 0.0
    %609 = vmatpush2.xpose.msra.mxu0 0.0
    %610 = vmatprep.subr.mxu0 0.0
    %611 = vmatpush2.xpose.msra.mxu0 0.0
    %612 = vmatprep.subr.mxu0 0.0
    %613 = vmatpush2.xpose.msra.mxu0 0.0
    %614 = vmatprep.subr.mxu0 0.0
    %615 = vmatpush2.xpose.msra.mxu0 0.0
    %616 = vmatprep.subr.mxu0 0.0
    %617 = vmatpush2.xpose.msra.mxu0 0.0
    %618 = vmatprep.subr.mxu0 0.0
    %619 = vmatpush2.xpose.msra.mxu0 0.0
    %620 = vmatprep.subr.mxu0 0.0
    %621 = vmatpush2.xpose.msra.mxu0 0.0
    %622 = vmatprep.subr.mxu0 0.0
    %623 = vmatpush2.xpose.msra.mxu0 0.0
    %624 = vmatprep.subr.mxu0 0.0
    %625 = vmatpush2.xpose.msra.mxu0 0.0
    %626 = vmatprep.subr.mxu0 0.0
    %627 = vmatpush2.xpose.msra.mxu0 0.0
    %628 = vmatprep.subr.mxu0 0.0
    %629 = vmatpush2.xpose.msra.mxu0 0.0
    %630 = vmatprep.subr.mxu0 0.0
    %631 = vmatpush2.xpose.msra.mxu0 0.0
    %632 = vmatprep.subr.mxu0 0.0
    %633 = vmatpush2.xpose.msra.mxu0 0.0
    %634 = vmatprep.subr.mxu0 0.0
    %635 = vmatpush2.xpose.msra.mxu0 0.0
    %636 = vmatprep.mubr.f32.mxu0 0.0
    %637 = vmatmul.mubr.f32.gmra.mxu0 %v568
    %v638 = vpop.f32.mrf.mxu0
    %v639 = vadd.f32 0.0, %v638
    %v640 = vpop.f32.mrf.mxu0
    %641 = vdwg.mxu0
    %v642 = vsel %vm303, -1e+30, %v561
    %v643 = vsel %vm303, -1e+30, %v639
    %v644 = vsel %vm148, %v642, -inf
    %645 = vmax.xlane.f32.xlu0 %v644
    %v646 = vpop.xlane.xlu0 %645
    %v647 = vsel %vm148, %v643, -inf
    %648 = vmax.xlane.f32.xlu0 %v647
    %v649 = vpop.xlane.xlu0 %648
    %v650 = vsub.f32 %v642, %v646
    %v651 = vsub.f32 %v643, %v649
    %v652 = vmul.f32 %v650, 1.442695
    %v653 = vpow.pop %v652
    %v654 = vmul.f32 %v651, 1.442695
    %v655 = vpow.pop %v654
    %v656 = vsel %vm148, %v653, 0.0
    %657 = vadd.xlane.f32.xlu0 %v656
    %v658 = vpop.xlane.xlu0 %657
    %v659 = vsel %vm148, %v655, 0.0
    %660 = vadd.xlane.f32.xlu0 %v659
    %v661 = vpop.xlane.xlu0 %660
    %v662 = vrcp.pop %v658
    %v663 = vrcp.pop %v661
    %v664 = vmul.f32 %v658, %v662
    %v665 = vmul.f32 %v661, %v663
    %v666 = vsub.f32 2.0, %v664
    %v667 = vsub.f32 2.0, %v665
    %v668 = vmul.f32 %v662, %v666
    %v669 = vmul.f32 %v663, %v667
    %670 = vrot.lane.b32.xlu0 %v130, 56
    %v671 = vpop.permute.xlu0 %670
    %v674 = vsel %vm148, %v653, 0
    %676 = vmatprep.subr.mxu0 0.0
    %677 = vmatpush1.msra.mxu0 0.0
    %678 = vmatprep.subr.mxu0 0.0
    %679 = vmatpush1.msra.mxu0 0.0
    %680 = vmatprep.subr.mxu0 0.0
    %681 = vmatpush1.msra.mxu0 0.0
    %682 = vmatprep.subr.mxu0 0.0
    %683 = vmatpush1.msra.mxu0 0.0
    %684 = vmatprep.subr.mxu0 0.0
    %685 = vmatpush1.msra.mxu0 0.0
    %686 = vmatprep.subr.mxu0 0.0
    %687 = vmatpush1.msra.mxu0 0.0
    %688 = vmatprep.subr.mxu0 0.0
    %689 = vmatpush1.msra.mxu0 0.0
    %690 = vmatprep.subr.mxu0 0.0
    %691 = vmatpush1.msra.mxu0 0.0
    %692 = vmatprep.subr.mxu0 0.0
    %693 = vmatpush1.msra.mxu0 0.0
    %694 = vmatprep.subr.mxu0 0.0
    %695 = vmatpush1.msra.mxu0 0.0
    %696 = vmatprep.subr.mxu0 0.0
    %697 = vmatpush1.msra.mxu0 0.0
    %698 = vmatprep.subr.mxu0 0.0
    %699 = vmatpush1.msra.mxu0 0.0
    %700 = vmatprep.subr.mxu0 0.0
    %701 = vmatpush1.msra.mxu0 0.0
    %702 = vmatprep.subr.mxu0 0.0
    %703 = vmatpush1.msra.mxu0 0.0
    %704 = vmatprep.subr.mxu0 0.0
    %705 = vmatpush1.msra.mxu0 0.0
    %706 = vmatprep.subr.mxu0 0.0
    %707 = vmatpush1.msra.mxu0 %v671
    %708 = vmatprep.subr.mxu0 0.0
    %709 = vmatpush2.msra.mxu0 0.0
    %710 = vmatprep.subr.mxu0 0.0
    %711 = vmatpush2.msra.mxu0 0.0
    %712 = vmatprep.subr.mxu0 0.0
    %713 = vmatpush2.msra.mxu0 0.0
    %714 = vmatprep.subr.mxu0 0.0
    %715 = vmatpush2.msra.mxu0 0.0
    %716 = vmatprep.subr.mxu0 0.0
    %717 = vmatpush2.msra.mxu0 0.0
    %718 = vmatprep.subr.mxu0 0.0
    %719 = vmatpush2.msra.mxu0 0.0
    %720 = vmatprep.subr.mxu0 0.0
    %721 = vmatpush2.msra.mxu0 0.0
    %722 = vmatprep.subr.mxu0 0.0
    %723 = vmatpush2.msra.mxu0 0.0
    %724 = vmatprep.subr.mxu0 0.0
    %725 = vmatpush2.msra.mxu0 0.0
    %726 = vmatprep.subr.mxu0 0.0
    %727 = vmatpush2.msra.mxu0 0.0
    %728 = vmatprep.subr.mxu0 0.0
    %729 = vmatpush2.msra.mxu0 0.0
    %730 = vmatprep.subr.mxu0 0.0
    %731 = vmatpush2.msra.mxu0 0.0
    %732 = vmatprep.subr.mxu0 0.0
    %733 = vmatpush2.msra.mxu0 0.0
    %734 = vmatprep.subr.mxu0 0.0
    %735 = vmatpush2.msra.mxu0 0.0
    %736 = vmatprep.subr.mxu0 0.0
    %737 = vmatpush2.msra.mxu0 0.0
    %738 = vmatprep.subr.mxu0 0.0
    %739 = vmatpush2.msra.mxu0 0.0
    %740 = vmatprep.mubr.f32.mxu0 0.0
    %741 = vmatmul.mubr.f32.gmra.mxu0 %v674
    %v742 = vpop.f32.mrf.mxu0
    %v743 = vadd.f32 0.0, %v742
    %v744 = vpop.f32.mrf.mxu0
    %745 = vdwg.mxu0
    %746 = vrot.lane.b32.xlu0 %v135, 56
    %v747 = vpop.permute.xlu0 %746
    %v750 = vsel %vm148, %v655, 0
    %752 = vmatprep.subr.mxu0 0.0
    %753 = vmatpush1.msra.mxu0 0.0
    %754 = vmatprep.subr.mxu0 0.0
    %755 = vmatpush1.msra.mxu0 0.0
    %756 = vmatprep.subr.mxu0 0.0
    %757 = vmatpush1.msra.mxu0 0.0
    %758 = vmatprep.subr.mxu0 0.0
    %759 = vmatpush1.msra.mxu0 0.0
    %760 = vmatprep.subr.mxu0 0.0
    %761 = vmatpush1.msra.mxu0 0.0
    %762 = vmatprep.subr.mxu0 0.0
    %763 = vmatpush1.msra.mxu0 0.0
    %764 = vmatprep.subr.mxu0 0.0
    %765 = vmatpush1.msra.mxu0 0.0
    %766 = vmatprep.subr.mxu0 0.0
    %767 = vmatpush1.msra.mxu0 0.0
    %768 = vmatprep.subr.mxu0 0.0
    %769 = vmatpush1.msra.mxu0 0.0
    %770 = vmatprep.subr.mxu0 0.0
    %771 = vmatpush1.msra.mxu0 0.0
    %772 = vmatprep.subr.mxu0 0.0
    %773 = vmatpush1.msra.mxu0 0.0
    %774 = vmatprep.subr.mxu0 0.0
    %775 = vmatpush1.msra.mxu0 0.0
    %776 = vmatprep.subr.mxu0 0.0
    %777 = vmatpush1.msra.mxu0 0.0
    %778 = vmatprep.subr.mxu0 0.0
    %779 = vmatpush1.msra.mxu0 0.0
    %780 = vmatprep.subr.mxu0 0.0
    %781 = vmatpush1.msra.mxu0 0.0
    %782 = vmatprep.subr.mxu0 0.0
    %783 = vmatpush1.msra.mxu0 %v747
    %784 = vmatprep.subr.mxu0 0.0
    %785 = vmatpush2.msra.mxu0 0.0
    %786 = vmatprep.subr.mxu0 0.0
    %787 = vmatpush2.msra.mxu0 0.0
    %788 = vmatprep.subr.mxu0 0.0
    %789 = vmatpush2.msra.mxu0 0.0
    %790 = vmatprep.subr.mxu0 0.0
    %791 = vmatpush2.msra.mxu0 0.0
    %792 = vmatprep.subr.mxu0 0.0
    %793 = vmatpush2.msra.mxu0 0.0
    %794 = vmatprep.subr.mxu0 0.0
    %795 = vmatpush2.msra.mxu0 0.0
    %796 = vmatprep.subr.mxu0 0.0
    %797 = vmatpush2.msra.mxu0 0.0
    %798 = vmatprep.subr.mxu0 0.0
    %799 = vmatpush2.msra.mxu0 0.0
    %800 = vmatprep.subr.mxu0 0.0
    %801 = vmatpush2.msra.mxu0 0.0
    %802 = vmatprep.subr.mxu0 0.0
    %803 = vmatpush2.msra.mxu0 0.0
    %804 = vmatprep.subr.mxu0 0.0
    %805 = vmatpush2.msra.mxu0 0.0
    %806 = vmatprep.subr.mxu0 0.0
    %807 = vmatpush2.msra.mxu0 0.0
    %808 = vmatprep.subr.mxu0 0.0
    %809 = vmatpush2.msra.mxu0 0.0
    %810 = vmatprep.subr.mxu0 0.0
    %811 = vmatpush2.msra.mxu0 0.0
    %812 = vmatprep.subr.mxu0 0.0
    %813 = vmatpush2.msra.mxu0 0.0
    %814 = vmatprep.subr.mxu0 0.0
    %815 = vmatpush2.msra.mxu0 0.0
    %816 = vmatprep.mubr.f32.mxu0 0.0
    %817 = vmatmul.mubr.f32.gmra.mxu0 %v750
    %v818 = vpop.f32.mrf.mxu0
    %v819 = vadd.f32 0.0, %v818
    %v820 = vpop.f32.mrf.mxu0
    %821 = vdwg.mxu0
    %v822 = vmul.f32 %v743, %v668
    %v823 = vmul.f32 %v819, %v669
    %824 = vrot.lane.b32.xlu0 %v138, 112
    %v825 = vpop.permute.xlu0 %824
    %826 = vrot.lane.b32.xlu0 %v130, 80
    %v827 = vpop.permute.xlu0 %826
    %v828 = vsel %vm148, %v825, 0
    %v830 = vsel %vm148, %v827, 0
    %832 = vmatprep.subr.mxu0 0.0
    %833 = vmatpush1.xpose.msra.mxu0 0.0
    %834 = vmatprep.subr.mxu0 0.0
    %835 = vmatpush1.xpose.msra.mxu0 0.0
    %836 = vmatprep.subr.mxu0 0.0
    %837 = vmatpush1.xpose.msra.mxu0 0.0
    %838 = vmatprep.subr.mxu0 0.0
    %839 = vmatpush1.xpose.msra.mxu0 0.0
    %840 = vmatprep.subr.mxu0 0.0
    %841 = vmatpush1.xpose.msra.mxu0 0.0
    %842 = vmatprep.subr.mxu0 0.0
    %843 = vmatpush1.xpose.msra.mxu0 0.0
    %844 = vmatprep.subr.mxu0 0.0
    %845 = vmatpush1.xpose.msra.mxu0 0.0
    %846 = vmatprep.subr.mxu0 0.0
    %847 = vmatpush1.xpose.msra.mxu0 0.0
    %848 = vmatprep.subr.mxu0 0.0
    %849 = vmatpush1.xpose.msra.mxu0 0.0
    %850 = vmatprep.subr.mxu0 0.0
    %851 = vmatpush1.xpose.msra.mxu0 0.0
    %852 = vmatprep.subr.mxu0 0.0
    %853 = vmatpush1.xpose.msra.mxu0 0.0
    %854 = vmatprep.subr.mxu0 0.0
    %855 = vmatpush1.xpose.msra.mxu0 0.0
    %856 = vmatprep.subr.mxu0 0.0
    %857 = vmatpush1.xpose.msra.mxu0 0.0
    %858 = vmatprep.subr.mxu0 0.0
    %859 = vmatpush1.xpose.msra.mxu0 0.0
    %860 = vmatprep.subr.mxu0 0.0
    %861 = vmatpush1.xpose.msra.mxu0 0.0
    %862 = vmatprep.subr.mxu0 0.0
    %863 = vmatpush1.xpose.msra.mxu0 %v830
    %864 = vmatprep.subr.mxu0 0.0
    %865 = vmatpush2.xpose.msra.mxu0 0.0
    %866 = vmatprep.subr.mxu0 0.0
    %867 = vmatpush2.xpose.msra.mxu0 0.0
    %868 = vmatprep.subr.mxu0 0.0
    %869 = vmatpush2.xpose.msra.mxu0 0.0
    %870 = vmatprep.subr.mxu0 0.0
    %871 = vmatpush2.xpose.msra.mxu0 0.0
    %872 = vmatprep.subr.mxu0 0.0
    %873 = vmatpush2.xpose.msra.mxu0 0.0
    %874 = vmatprep.subr.mxu0 0.0
    %875 = vmatpush2.xpose.msra.mxu0 0.0
    %876 = vmatprep.subr.mxu0 0.0
    %877 = vmatpush2.xpose.msra.mxu0 0.0
    %878 = vmatprep.subr.mxu0 0.0
    %879 = vmatpush2.xpose.msra.mxu0 0.0
    %880 = vmatprep.subr.mxu0 0.0
    %881 = vmatpush2.xpose.msra.mxu0 0.0
    %882 = vmatprep.subr.mxu0 0.0
    %883 = vmatpush2.xpose.msra.mxu0 0.0
    %884 = vmatprep.subr.mxu0 0.0
    %885 = vmatpush2.xpose.msra.mxu0 0.0
    %886 = vmatprep.subr.mxu0 0.0
    %887 = vmatpush2.xpose.msra.mxu0 0.0
    %888 = vmatprep.subr.mxu0 0.0
    %889 = vmatpush2.xpose.msra.mxu0 0.0
    %890 = vmatprep.subr.mxu0 0.0
    %891 = vmatpush2.xpose.msra.mxu0 0.0
    %892 = vmatprep.subr.mxu0 0.0
    %893 = vmatpush2.xpose.msra.mxu0 0.0
    %894 = vmatprep.subr.mxu0 0.0
    %895 = vmatpush2.xpose.msra.mxu0 0.0
    %896 = vmatprep.mubr.f32.mxu0 0.0
    %897 = vmatmul.mubr.f32.gmra.mxu0 %v828
    %v898 = vpop.f32.mrf.mxu0
    %v899 = vadd.f32 0.0, %v898
    %v900 = vpop.f32.mrf.mxu0
    %901 = vdwg.mxu0
    %902 = vrot.lane.b32.xlu0 %v139, 112
    %v903 = vpop.permute.xlu0 %902
    %904 = vrot.lane.b32.xlu0 %v135, 80
    %v905 = vpop.permute.xlu0 %904
    %v906 = vsel %vm148, %v903, 0
    %v908 = vsel %vm148, %v905, 0
    %910 = vmatprep.subr.mxu0 0.0
    %911 = vmatpush1.xpose.msra.mxu0 0.0
    %912 = vmatprep.subr.mxu0 0.0
    %913 = vmatpush1.xpose.msra.mxu0 0.0
    %914 = vmatprep.subr.mxu0 0.0
    %915 = vmatpush1.xpose.msra.mxu0 0.0
    %916 = vmatprep.subr.mxu0 0.0
    %917 = vmatpush1.xpose.msra.mxu0 0.0
    %918 = vmatprep.subr.mxu0 0.0
    %919 = vmatpush1.xpose.msra.mxu0 0.0
    %920 = vmatprep.subr.mxu0 0.0
    %921 = vmatpush1.xpose.msra.mxu0 0.0
    %922 = vmatprep.subr.mxu0 0.0
    %923 = vmatpush1.xpose.msra.mxu0 0.0
    %924 = vmatprep.subr.mxu0 0.0
    %925 = vmatpush1.xpose.msra.mxu0 0.0
    %926 = vmatprep.subr.mxu0 0.0
    %927 = vmatpush1.xpose.msra.mxu0 0.0
    %928 = vmatprep.subr.mxu0 0.0
    %929 = vmatpush1.xpose.msra.mxu0 0.0
    %930 = vmatprep.subr.mxu0 0.0
    %931 = vmatpush1.xpose.msra.mxu0 0.0
    %932 = vmatprep.subr.mxu0 0.0
    %933 = vmatpush1.xpose.msra.mxu0 0.0
    %934 = vmatprep.subr.mxu0 0.0
    %935 = vmatpush1.xpose.msra.mxu0 0.0
    %936 = vmatprep.subr.mxu0 0.0
    %937 = vmatpush1.xpose.msra.mxu0 0.0
    %938 = vmatprep.subr.mxu0 0.0
    %939 = vmatpush1.xpose.msra.mxu0 0.0
    %940 = vmatprep.subr.mxu0 0.0
    %941 = vmatpush1.xpose.msra.mxu0 %v908
    %942 = vmatprep.subr.mxu0 0.0
    %943 = vmatpush2.xpose.msra.mxu0 0.0
    %944 = vmatprep.subr.mxu0 0.0
    %945 = vmatpush2.xpose.msra.mxu0 0.0
    %946 = vmatprep.subr.mxu0 0.0
    %947 = vmatpush2.xpose.msra.mxu0 0.0
    %948 = vmatprep.subr.mxu0 0.0
    %949 = vmatpush2.xpose.msra.mxu0 0.0
    %950 = vmatprep.subr.mxu0 0.0
    %951 = vmatpush2.xpose.msra.mxu0 0.0
    %952 = vmatprep.subr.mxu0 0.0
    %953 = vmatpush2.xpose.msra.mxu0 0.0
    %954 = vmatprep.subr.mxu0 0.0
    %955 = vmatpush2.xpose.msra.mxu0 0.0
    %956 = vmatprep.subr.mxu0 0.0
    %957 = vmatpush2.xpose.msra.mxu0 0.0
    %958 = vmatprep.subr.mxu0 0.0
    %959 = vmatpush2.xpose.msra.mxu0 0.0
    %960 = vmatprep.subr.mxu0 0.0
    %961 = vmatpush2.xpose.msra.mxu0 0.0
    %962 = vmatprep.subr.mxu0 0.0
    %963 = vmatpush2.xpose.msra.mxu0 0.0
    %964 = vmatprep.subr.mxu0 0.0
    %965 = vmatpush2.xpose.msra.mxu0 0.0
    %966 = vmatprep.subr.mxu0 0.0
    %967 = vmatpush2.xpose.msra.mxu0 0.0
    %968 = vmatprep.subr.mxu0 0.0
    %969 = vmatpush2.xpose.msra.mxu0 0.0
    %970 = vmatprep.subr.mxu0 0.0
    %971 = vmatpush2.xpose.msra.mxu0 0.0
    %972 = vmatprep.subr.mxu0 0.0
    %973 = vmatpush2.xpose.msra.mxu0 0.0
    %974 = vmatprep.mubr.f32.mxu0 0.0
    %975 = vmatmul.mubr.f32.gmra.mxu0 %v906
    %v976 = vpop.f32.mrf.mxu0
    %v977 = vadd.f32 0.0, %v976
    %v978 = vpop.f32.mrf.mxu0
    %979 = vdwg.mxu0
    %v980 = vsel %vm303, -1e+30, %v899
    %v981 = vsel %vm303, -1e+30, %v977
    %v982 = vsel %vm148, %v980, -inf
    %983 = vmax.xlane.f32.xlu0 %v982
    %v984 = vpop.xlane.xlu0 %983
    %v985 = vsel %vm148, %v981, -inf
    %986 = vmax.xlane.f32.xlu0 %v985
    %v987 = vpop.xlane.xlu0 %986
    %v988 = vsub.f32 %v980, %v984
    %v989 = vsub.f32 %v981, %v987
    %v990 = vmul.f32 %v988, 1.442695
    %v991 = vpow.pop %v990
    %v992 = vmul.f32 %v989, 1.442695
    %v993 = vpow.pop %v992
    %v994 = vsel %vm148, %v991, 0.0
    %995 = vadd.xlane.f32.xlu0 %v994
    %v996 = vpop.xlane.xlu0 %995
    %v997 = vsel %vm148, %v993, 0.0
    %998 = vadd.xlane.f32.xlu0 %v997
    %v999 = vpop.xlane.xlu0 %998
    %v1000 = vrcp.pop %v996
    %v1001 = vrcp.pop %v999
    %v1002 = vmul.f32 %v996, %v1000
    %v1003 = vmul.f32 %v999, %v1001
    %v1004 = vsub.f32 2.0, %v1002
    %v1005 = vsub.f32 2.0, %v1003
    %v1006 = vmul.f32 %v1000, %v1004
    %v1007 = vmul.f32 %v1001, %v1005
    %1008 = vrot.lane.b32.xlu0 %v130, 48
    %v1009 = vpop.permute.xlu0 %1008
    %v1012 = vsel %vm148, %v991, 0
    %1014 = vmatprep.subr.mxu0 0.0
    %1015 = vmatpush1.msra.mxu0 0.0
    %1016 = vmatprep.subr.mxu0 0.0
    %1017 = vmatpush1.msra.mxu0 0.0
    %1018 = vmatprep.subr.mxu0 0.0
    %1019 = vmatpush1.msra.mxu0 0.0
    %1020 = vmatprep.subr.mxu0 0.0
    %1021 = vmatpush1.msra.mxu0 0.0
    %1022 = vmatprep.subr.mxu0 0.0
    %1023 = vmatpush1.msra.mxu0 0.0
    %1024 = vmatprep.subr.mxu0 0.0
    %1025 = vmatpush1.msra.mxu0 0.0
    %1026 = vmatprep.subr.mxu0 0.0
    %1027 = vmatpush1.msra.mxu0 0.0
    %1028 = vmatprep.subr.mxu0 0.0
    %1029 = vmatpush1.msra.mxu0 0.0
    %1030 = vmatprep.subr.mxu0 0.0
    %1031 = vmatpush1.msra.mxu0 0.0
    %1032 = vmatprep.subr.mxu0 0.0
    %1033 = vmatpush1.msra.mxu0 0.0
    %1034 = vmatprep.subr.mxu0 0.0
    %1035 = vmatpush1.msra.mxu0 0.0
    %1036 = vmatprep.subr.mxu0 0.0
    %1037 = vmatpush1.msra.mxu0 0.0
    %1038 = vmatprep.subr.mxu0 0.0
    %1039 = vmatpush1.msra.mxu0 0.0
    %1040 = vmatprep.subr.mxu0 0.0
    %1041 = vmatpush1.msra.mxu0 0.0
    %1042 = vmatprep.subr.mxu0 0.0
    %1043 = vmatpush1.msra.mxu0 0.0
    %1044 = vmatprep.subr.mxu0 0.0
    %1045 = vmatpush1.msra.mxu0 %v1009
    %1046 = vmatprep.subr.mxu0 0.0
    %1047 = vmatpush2.msra.mxu0 0.0
    %1048 = vmatprep.subr.mxu0 0.0
    %1049 = vmatpush2.msra.mxu0 0.0
    %1050 = vmatprep.subr.mxu0 0.0
    %1051 = vmatpush2.msra.mxu0 0.0
    %1052 = vmatprep.subr.mxu0 0.0
    %1053 = vmatpush2.msra.mxu0 0.0
    %1054 = vmatprep.subr.mxu0 0.0
    %1055 = vmatpush2.msra.mxu0 0.0
    %1056 = vmatprep.subr.mxu0 0.0
    %1057 = vmatpush2.msra.mxu0 0.0
    %1058 = vmatprep.subr.mxu0 0.0
    %1059 = vmatpush2.msra.mxu0 0.0
    %1060 = vmatprep.subr.mxu0 0.0
    %1061 = vmatpush2.msra.mxu0 0.0
    %1062 = vmatprep.subr.mxu0 0.0
    %1063 = vmatpush2.msra.mxu0 0.0
    %1064 = vmatprep.subr.mxu0 0.0
    %1065 = vmatpush2.msra.mxu0 0.0
    %1066 = vmatprep.subr.mxu0 0.0
    %1067 = vmatpush2.msra.mxu0 0.0
    %1068 = vmatprep.subr.mxu0 0.0
    %1069 = vmatpush2.msra.mxu0 0.0
    %1070 = vmatprep.subr.mxu0 0.0
    %1071 = vmatpush2.msra.mxu0 0.0
    %1072 = vmatprep.subr.mxu0 0.0
    %1073 = vmatpush2.msra.mxu0 0.0
    %1074 = vmatprep.subr.mxu0 0.0
    %1075 = vmatpush2.msra.mxu0 0.0
    %1076 = vmatprep.subr.mxu0 0.0
    %1077 = vmatpush2.msra.mxu0 0.0
    %1078 = vmatprep.mubr.f32.mxu0 0.0
    %1079 = vmatmul.mubr.f32.gmra.mxu0 %v1012
    %v1080 = vpop.f32.mrf.mxu0
    %v1081 = vadd.f32 0.0, %v1080
    %v1082 = vpop.f32.mrf.mxu0
    %1083 = vdwg.mxu0
    %1084 = vrot.lane.b32.xlu0 %v135, 48
    %v1085 = vpop.permute.xlu0 %1084
    %v1088 = vsel %vm148, %v993, 0
    %1090 = vmatprep.subr.mxu0 0.0
    %1091 = vmatpush1.msra.mxu0 0.0
    %1092 = vmatprep.subr.mxu0 0.0
    %1093 = vmatpush1.msra.mxu0 0.0
    %1094 = vmatprep.subr.mxu0 0.0
    %1095 = vmatpush1.msra.mxu0 0.0
    %1096 = vmatprep.subr.mxu0 0.0
    %1097 = vmatpush1.msra.mxu0 0.0
    %1098 = vmatprep.subr.mxu0 0.0
    %1099 = vmatpush1.msra.mxu0 0.0
    %1100 = vmatprep.subr.mxu0 0.0
    %1101 = vmatpush1.msra.mxu0 0.0
    %1102 = vmatprep.subr.mxu0 0.0
    %1103 = vmatpush1.msra.mxu0 0.0
    %1104 = vmatprep.subr.mxu0 0.0
    %1105 = vmatpush1.msra.mxu0 0.0
    %1106 = vmatprep.subr.mxu0 0.0
    %1107 = vmatpush1.msra.mxu0 0.0
    %1108 = vmatprep.subr.mxu0 0.0
    %1109 = vmatpush1.msra.mxu0 0.0
    %1110 = vmatprep.subr.mxu0 0.0
    %1111 = vmatpush1.msra.mxu0 0.0
    %1112 = vmatprep.subr.mxu0 0.0
    %1113 = vmatpush1.msra.mxu0 0.0
    %1114 = vmatprep.subr.mxu0 0.0
    %1115 = vmatpush1.msra.mxu0 0.0
    %1116 = vmatprep.subr.mxu0 0.0
    %1117 = vmatpush1.msra.mxu0 0.0
    %1118 = vmatprep.subr.mxu0 0.0
    %1119 = vmatpush1.msra.mxu0 0.0
    %1120 = vmatprep.subr.mxu0 0.0
    %1121 = vmatpush1.msra.mxu0 %v1085
    %1122 = vmatprep.subr.mxu0 0.0
    %1123 = vmatpush2.msra.mxu0 0.0
    %1124 = vmatprep.subr.mxu0 0.0
    %1125 = vmatpush2.msra.mxu0 0.0
    %1126 = vmatprep.subr.mxu0 0.0
    %1127 = vmatpush2.msra.mxu0 0.0
    %1128 = vmatprep.subr.mxu0 0.0
    %1129 = vmatpush2.msra.mxu0 0.0
    %1130 = vmatprep.subr.mxu0 0.0
    %1131 = vmatpush2.msra.mxu0 0.0
    %1132 = vmatprep.subr.mxu0 0.0
    %1133 = vmatpush2.msra.mxu0 0.0
    %1134 = vmatprep.subr.mxu0 0.0
    %1135 = vmatpush2.msra.mxu0 0.0
    %1136 = vmatprep.subr.mxu0 0.0
    %1137 = vmatpush2.msra.mxu0 0.0
    %1138 = vmatprep.subr.mxu0 0.0
    %1139 = vmatpush2.msra.mxu0 0.0
    %1140 = vmatprep.subr.mxu0 0.0
    %1141 = vmatpush2.msra.mxu0 0.0
    %1142 = vmatprep.subr.mxu0 0.0
    %1143 = vmatpush2.msra.mxu0 0.0
    %1144 = vmatprep.subr.mxu0 0.0
    %1145 = vmatpush2.msra.mxu0 0.0
    %1146 = vmatprep.subr.mxu0 0.0
    %1147 = vmatpush2.msra.mxu0 0.0
    %1148 = vmatprep.subr.mxu0 0.0
    %1149 = vmatpush2.msra.mxu0 0.0
    %1150 = vmatprep.subr.mxu0 0.0
    %1151 = vmatpush2.msra.mxu0 0.0
    %1152 = vmatprep.subr.mxu0 0.0
    %1153 = vmatpush2.msra.mxu0 0.0
    %1154 = vmatprep.mubr.f32.mxu0 0.0
    %1155 = vmatmul.mubr.f32.gmra.mxu0 %v1088
    %v1156 = vpop.f32.mrf.mxu0
    %v1157 = vadd.f32 0.0, %v1156
    %v1158 = vpop.f32.mrf.mxu0
    %1159 = vdwg.mxu0
    %v1160 = vmul.f32 %v1081, %v1006
    %v1161 = vmul.f32 %v1157, %v1007
    %1162 = vrot.lane.b32.xlu0 %v138, 104
    %v1163 = vpop.permute.xlu0 %1162
    %1164 = vrot.lane.b32.xlu0 %v130, 72
    %v1165 = vpop.permute.xlu0 %1164
    %v1166 = vsel %vm148, %v1163, 0
    %v1168 = vsel %vm148, %v1165, 0
    %1170 = vmatprep.subr.mxu0 0.0
    %1171 = vmatpush1.xpose.msra.mxu0 0.0
    %1172 = vmatprep.subr.mxu0 0.0
    %1173 = vmatpush1.xpose.msra.mxu0 0.0
    %1174 = vmatprep.subr.mxu0 0.0
    %1175 = vmatpush1.xpose.msra.mxu0 0.0
    %1176 = vmatprep.subr.mxu0 0.0
    %1177 = vmatpush1.xpose.msra.mxu0 0.0
    %1178 = vmatprep.subr.mxu0 0.0
    %1179 = vmatpush1.xpose.msra.mxu0 0.0
    %1180 = vmatprep.subr.mxu0 0.0
    %1181 = vmatpush1.xpose.msra.mxu0 0.0
    %1182 = vmatprep.subr.mxu0 0.0
    %1183 = vmatpush1.xpose.msra.mxu0 0.0
    %1184 = vmatprep.subr.mxu0 0.0
    %1185 = vmatpush1.xpose.msra.mxu0 0.0
    %1186 = vmatprep.subr.mxu0 0.0
    %1187 = vmatpush1.xpose.msra.mxu0 0.0
    %1188 = vmatprep.subr.mxu0 0.0
    %1189 = vmatpush1.xpose.msra.mxu0 0.0
    %1190 = vmatprep.subr.mxu0 0.0
    %1191 = vmatpush1.xpose.msra.mxu0 0.0
    %1192 = vmatprep.subr.mxu0 0.0
    %1193 = vmatpush1.xpose.msra.mxu0 0.0
    %1194 = vmatprep.subr.mxu0 0.0
    %1195 = vmatpush1.xpose.msra.mxu0 0.0
    %1196 = vmatprep.subr.mxu0 0.0
    %1197 = vmatpush1.xpose.msra.mxu0 0.0
    %1198 = vmatprep.subr.mxu0 0.0
    %1199 = vmatpush1.xpose.msra.mxu0 0.0
    %1200 = vmatprep.subr.mxu0 0.0
    %1201 = vmatpush1.xpose.msra.mxu0 %v1168
    %1202 = vmatprep.subr.mxu0 0.0
    %1203 = vmatpush2.xpose.msra.mxu0 0.0
    %1204 = vmatprep.subr.mxu0 0.0
    %1205 = vmatpush2.xpose.msra.mxu0 0.0
    %1206 = vmatprep.subr.mxu0 0.0
    %1207 = vmatpush2.xpose.msra.mxu0 0.0
    %1208 = vmatprep.subr.mxu0 0.0
    %1209 = vmatpush2.xpose.msra.mxu0 0.0
    %1210 = vmatprep.subr.mxu0 0.0
    %1211 = vmatpush2.xpose.msra.mxu0 0.0
    %1212 = vmatprep.subr.mxu0 0.0
    %1213 = vmatpush2.xpose.msra.mxu0 0.0
    %1214 = vmatprep.subr.mxu0 0.0
    %1215 = vmatpush2.xpose.msra.mxu0 0.0
    %1216 = vmatprep.subr.mxu0 0.0
    %1217 = vmatpush2.xpose.msra.mxu0 0.0
    %1218 = vmatprep.subr.mxu0 0.0
    %1219 = vmatpush2.xpose.msra.mxu0 0.0
    %1220 = vmatprep.subr.mxu0 0.0
    %1221 = vmatpush2.xpose.msra.mxu0 0.0
    %1222 = vmatprep.subr.mxu0 0.0
    %1223 = vmatpush2.xpose.msra.mxu0 0.0
    %1224 = vmatprep.subr.mxu0 0.0
    %1225 = vmatpush2.xpose.msra.mxu0 0.0
    %1226 = vmatprep.subr.mxu0 0.0
    %1227 = vmatpush2.xpose.msra.mxu0 0.0
    %1228 = vmatprep.subr.mxu0 0.0
    %1229 = vmatpush2.xpose.msra.mxu0 0.0
    %1230 = vmatprep.subr.mxu0 0.0
    %1231 = vmatpush2.xpose.msra.mxu0 0.0
    %1232 = vmatprep.subr.mxu0 0.0
    %1233 = vmatpush2.xpose.msra.mxu0 0.0
    %1234 = vmatprep.mubr.f32.mxu0 0.0
    %1235 = vmatmul.mubr.f32.gmra.mxu0 %v1166
    %v1236 = vpop.f32.mrf.mxu0
    %v1237 = vadd.f32 0.0, %v1236
    %v1238 = vpop.f32.mrf.mxu0
    %1239 = vdwg.mxu0
    %1240 = vrot.lane.b32.xlu0 %v139, 104
    %v1241 = vpop.permute.xlu0 %1240
    %1242 = vrot.lane.b32.xlu0 %v135, 72
    %v1243 = vpop.permute.xlu0 %1242
    %v1244 = vsel %vm148, %v1241, 0
    %v1246 = vsel %vm148, %v1243, 0
    %1248 = vmatprep.subr.mxu0 0.0
    %1249 = vmatpush1.xpose.msra.mxu0 0.0
    %1250 = vmatprep.subr.mxu0 0.0
    %1251 = vmatpush1.xpose.msra.mxu0 0.0
    %1252 = vmatprep.subr.mxu0 0.0
    %1253 = vmatpush1.xpose.msra.mxu0 0.0
    %1254 = vmatprep.subr.mxu0 0.0
    %1255 = vmatpush1.xpose.msra.mxu0 0.0
    %1256 = vmatprep.subr.mxu0 0.0
    %1257 = vmatpush1.xpose.msra.mxu0 0.0
    %1258 = vmatprep.subr.mxu0 0.0
    %1259 = vmatpush1.xpose.msra.mxu0 0.0
    %1260 = vmatprep.subr.mxu0 0.0
    %1261 = vmatpush1.xpose.msra.mxu0 0.0
    %1262 = vmatprep.subr.mxu0 0.0
    %1263 = vmatpush1.xpose.msra.mxu0 0.0
    %1264 = vmatprep.subr.mxu0 0.0
    %1265 = vmatpush1.xpose.msra.mxu0 0.0
    %1266 = vmatprep.subr.mxu0 0.0
    %1267 = vmatpush1.xpose.msra.mxu0 0.0
    %1268 = vmatprep.subr.mxu0 0.0
    %1269 = vmatpush1.xpose.msra.mxu0 0.0
    %1270 = vmatprep.subr.mxu0 0.0
    %1271 = vmatpush1.xpose.msra.mxu0 0.0
    %1272 = vmatprep.subr.mxu0 0.0
    %1273 = vmatpush1.xpose.msra.mxu0 0.0
    %1274 = vmatprep.subr.mxu0 0.0
    %1275 = vmatpush1.xpose.msra.mxu0 0.0
    %1276 = vmatprep.subr.mxu0 0.0
    %1277 = vmatpush1.xpose.msra.mxu0 0.0
    %1278 = vmatprep.subr.mxu0 0.0
    %1279 = vmatpush1.xpose.msra.mxu0 %v1246
    %1280 = vmatprep.subr.mxu0 0.0
    %1281 = vmatpush2.xpose.msra.mxu0 0.0
    %1282 = vmatprep.subr.mxu0 0.0
    %1283 = vmatpush2.xpose.msra.mxu0 0.0
    %1284 = vmatprep.subr.mxu0 0.0
    %1285 = vmatpush2.xpose.msra.mxu0 0.0
    %1286 = vmatprep.subr.mxu0 0.0
    %1287 = vmatpush2.xpose.msra.mxu0 0.0
    %1288 = vmatprep.subr.mxu0 0.0
    %1289 = vmatpush2.xpose.msra.mxu0 0.0
    %1290 = vmatprep.subr.mxu0 0.0
    %1291 = vmatpush2.xpose.msra.mxu0 0.0
    %1292 = vmatprep.subr.mxu0 0.0
    %1293 = vmatpush2.xpose.msra.mxu0 0.0
    %1294 = vmatprep.subr.mxu0 0.0
    %1295 = vmatpush2.xpose.msra.mxu0 0.0
    %1296 = vmatprep.subr.mxu0 0.0
    %1297 = vmatpush2.xpose.msra.mxu0 0.0
    %1298 = vmatprep.subr.mxu0 0.0
    %1299 = vmatpush2.xpose.msra.mxu0 0.0
    %1300 = vmatprep.subr.mxu0 0.0
    %1301 = vmatpush2.xpose.msra.mxu0 0.0
    %1302 = vmatprep.subr.mxu0 0.0
    %1303 = vmatpush2.xpose.msra.mxu0 0.0
    %1304 = vmatprep.subr.mxu0 0.0
    %1305 = vmatpush2.xpose.msra.mxu0 0.0
    %1306 = vmatprep.subr.mxu0 0.0
    %1307 = vmatpush2.xpose.msra.mxu0 0.0
    %1308 = vmatprep.subr.mxu0 0.0
    %1309 = vmatpush2.xpose.msra.mxu0 0.0
    %1310 = vmatprep.subr.mxu0 0.0
    %1311 = vmatpush2.xpose.msra.mxu0 0.0
    %1312 = vmatprep.mubr.f32.mxu0 0.0
    %1313 = vmatmul.mubr.f32.gmra.mxu0 %v1244
    %v1314 = vpop.f32.mrf.mxu0
    %v1315 = vadd.f32 0.0, %v1314
    %v1316 = vpop.f32.mrf.mxu0
    %1317 = vdwg.mxu0
    %v1318 = vsel %vm303, -1e+30, %v1237
    %v1319 = vsel %vm303, -1e+30, %v1315
    %v1320 = vsel %vm148, %v1318, -inf
    %1321 = vmax.xlane.f32.xlu0 %v1320
    %v1322 = vpop.xlane.xlu0 %1321
    %v1323 = vsel %vm148, %v1319, -inf
    %1324 = vmax.xlane.f32.xlu0 %v1323
    %v1325 = vpop.xlane.xlu0 %1324
    %v1326 = vsub.f32 %v1318, %v1322
    %v1327 = vsub.f32 %v1319, %v1325
    %v1328 = vmul.f32 %v1326, 1.442695
    %v1329 = vpow.pop %v1328
    %v1330 = vmul.f32 %v1327, 1.442695
    %v1331 = vpow.pop %v1330
    %v1332 = vsel %vm148, %v1329, 0.0
    %1333 = vadd.xlane.f32.xlu0 %v1332
    %v1334 = vpop.xlane.xlu0 %1333
    %v1335 = vsel %vm148, %v1331, 0.0
    %1336 = vadd.xlane.f32.xlu0 %v1335
    %v1337 = vpop.xlane.xlu0 %1336
    %v1338 = vrcp.pop %v1334
    %v1339 = vrcp.pop %v1337
    %v1340 = vmul.f32 %v1334, %v1338
    %v1341 = vmul.f32 %v1337, %v1339
    %v1342 = vsub.f32 2.0, %v1340
    %v1343 = vsub.f32 2.0, %v1341
    %v1344 = vmul.f32 %v1338, %v1342
    %v1345 = vmul.f32 %v1339, %v1343
    %1346 = vrot.lane.b32.xlu0 %v130, 40
    %v1347 = vpop.permute.xlu0 %1346
    %v1350 = vsel %vm148, %v1329, 0
    %1352 = vmatprep.subr.mxu0 0.0
    %1353 = vmatpush1.msra.mxu0 0.0
    %1354 = vmatprep.subr.mxu0 0.0
    %1355 = vmatpush1.msra.mxu0 0.0
    %1356 = vmatprep.subr.mxu0 0.0
    %1357 = vmatpush1.msra.mxu0 0.0
    %1358 = vmatprep.subr.mxu0 0.0
    %1359 = vmatpush1.msra.mxu0 0.0
    %1360 = vmatprep.subr.mxu0 0.0
    %1361 = vmatpush1.msra.mxu0 0.0
    %1362 = vmatprep.subr.mxu0 0.0
    %1363 = vmatpush1.msra.mxu0 0.0
    %1364 = vmatprep.subr.mxu0 0.0
    %1365 = vmatpush1.msra.mxu0 0.0
    %1366 = vmatprep.subr.mxu0 0.0
    %1367 = vmatpush1.msra.mxu0 0.0
    %1368 = vmatprep.subr.mxu0 0.0
    %1369 = vmatpush1.msra.mxu0 0.0
    %1370 = vmatprep.subr.mxu0 0.0
    %1371 = vmatpush1.msra.mxu0 0.0
    %1372 = vmatprep.subr.mxu0 0.0
    %1373 = vmatpush1.msra.mxu0 0.0
    %1374 = vmatprep.subr.mxu0 0.0
    %1375 = vmatpush1.msra.mxu0 0.0
    %1376 = vmatprep.subr.mxu0 0.0
    %1377 = vmatpush1.msra.mxu0 0.0
    %1378 = vmatprep.subr.mxu0 0.0
    %1379 = vmatpush1.msra.mxu0 0.0
    %1380 = vmatprep.subr.mxu0 0.0
    %1381 = vmatpush1.msra.mxu0 0.0
    %1382 = vmatprep.subr.mxu0 0.0
    %1383 = vmatpush1.msra.mxu0 %v1347
    %1384 = vmatprep.subr.mxu0 0.0
    %1385 = vmatpush2.msra.mxu0 0.0
    %1386 = vmatprep.subr.mxu0 0.0
    %1387 = vmatpush2.msra.mxu0 0.0
    %1388 = vmatprep.subr.mxu0 0.0
    %1389 = vmatpush2.msra.mxu0 0.0
    %1390 = vmatprep.subr.mxu0 0.0
    %1391 = vmatpush2.msra.mxu0 0.0
    %1392 = vmatprep.subr.mxu0 0.0
    %1393 = vmatpush2.msra.mxu0 0.0
    %1394 = vmatprep.subr.mxu0 0.0
    %1395 = vmatpush2.msra.mxu0 0.0
    %1396 = vmatprep.subr.mxu0 0.0
    %1397 = vmatpush2.msra.mxu0 0.0
    %1398 = vmatprep.subr.mxu0 0.0
    %1399 = vmatpush2.msra.mxu0 0.0
    %1400 = vmatprep.subr.mxu0 0.0
    %1401 = vmatpush2.msra.mxu0 0.0
    %1402 = vmatprep.subr.mxu0 0.0
    %1403 = vmatpush2.msra.mxu0 0.0
    %1404 = vmatprep.subr.mxu0 0.0
    %1405 = vmatpush2.msra.mxu0 0.0
    %1406 = vmatprep.subr.mxu0 0.0
    %1407 = vmatpush2.msra.mxu0 0.0
    %1408 = vmatprep.subr.mxu0 0.0
    %1409 = vmatpush2.msra.mxu0 0.0
    %1410 = vmatprep.subr.mxu0 0.0
    %1411 = vmatpush2.msra.mxu0 0.0
    %1412 = vmatprep.subr.mxu0 0.0
    %1413 = vmatpush2.msra.mxu0 0.0
    %1414 = vmatprep.subr.mxu0 0.0
    %1415 = vmatpush2.msra.mxu0 0.0
    %1416 = vmatprep.mubr.f32.mxu0 0.0
    %1417 = vmatmul.mubr.f32.gmra.mxu0 %v1350
    %v1418 = vpop.f32.mrf.mxu0
    %v1419 = vadd.f32 0.0, %v1418
    %v1420 = vpop.f32.mrf.mxu0
    %1421 = vdwg.mxu0
    %1422 = vrot.lane.b32.xlu0 %v135, 40
    %v1423 = vpop.permute.xlu0 %1422
    %v1426 = vsel %vm148, %v1331, 0
    %1428 = vmatprep.subr.mxu0 0.0
    %1429 = vmatpush1.msra.mxu0 0.0
    %1430 = vmatprep.subr.mxu0 0.0
    %1431 = vmatpush1.msra.mxu0 0.0
    %1432 = vmatprep.subr.mxu0 0.0
    %1433 = vmatpush1.msra.mxu0 0.0
    %1434 = vmatprep.subr.mxu0 0.0
    %1435 = vmatpush1.msra.mxu0 0.0
    %1436 = vmatprep.subr.mxu0 0.0
    %1437 = vmatpush1.msra.mxu0 0.0
    %1438 = vmatprep.subr.mxu0 0.0
    %1439 = vmatpush1.msra.mxu0 0.0
    %1440 = vmatprep.subr.mxu0 0.0
    %1441 = vmatpush1.msra.mxu0 0.0
    %1442 = vmatprep.subr.mxu0 0.0
    %1443 = vmatpush1.msra.mxu0 0.0
    %1444 = vmatprep.subr.mxu0 0.0
    %1445 = vmatpush1.msra.mxu0 0.0
    %1446 = vmatprep.subr.mxu0 0.0
    %1447 = vmatpush1.msra.mxu0 0.0
    %1448 = vmatprep.subr.mxu0 0.0
    %1449 = vmatpush1.msra.mxu0 0.0
    %1450 = vmatprep.subr.mxu0 0.0
    %1451 = vmatpush1.msra.mxu0 0.0
    %1452 = vmatprep.subr.mxu0 0.0
    %1453 = vmatpush1.msra.mxu0 0.0
    %1454 = vmatprep.subr.mxu0 0.0
    %1455 = vmatpush1.msra.mxu0 0.0
    %1456 = vmatprep.subr.mxu0 0.0
    %1457 = vmatpush1.msra.mxu0 0.0
    %1458 = vmatprep.subr.mxu0 0.0
    %1459 = vmatpush1.msra.mxu0 %v1423
    %1460 = vmatprep.subr.mxu0 0.0
    %1461 = vmatpush2.msra.mxu0 0.0
    %1462 = vmatprep.subr.mxu0 0.0
    %1463 = vmatpush2.msra.mxu0 0.0
    %1464 = vmatprep.subr.mxu0 0.0
    %1465 = vmatpush2.msra.mxu0 0.0
    %1466 = vmatprep.subr.mxu0 0.0
    %1467 = vmatpush2.msra.mxu0 0.0
    %1468 = vmatprep.subr.mxu0 0.0
    %1469 = vmatpush2.msra.mxu0 0.0
    %1470 = vmatprep.subr.mxu0 0.0
    %1471 = vmatpush2.msra.mxu0 0.0
    %1472 = vmatprep.subr.mxu0 0.0
    %1473 = vmatpush2.msra.mxu0 0.0
    %1474 = vmatprep.subr.mxu0 0.0
    %1475 = vmatpush2.msra.mxu0 0.0
    %1476 = vmatprep.subr.mxu0 0.0
    %1477 = vmatpush2.msra.mxu0 0.0
    %1478 = vmatprep.subr.mxu0 0.0
    %1479 = vmatpush2.msra.mxu0 0.0
    %1480 = vmatprep.subr.mxu0 0.0
    %1481 = vmatpush2.msra.mxu0 0.0
    %1482 = vmatprep.subr.mxu0 0.0
    %1483 = vmatpush2.msra.mxu0 0.0
    %1484 = vmatprep.subr.mxu0 0.0
    %1485 = vmatpush2.msra.mxu0 0.0
    %1486 = vmatprep.subr.mxu0 0.0
    %1487 = vmatpush2.msra.mxu0 0.0
    %1488 = vmatprep.subr.mxu0 0.0
    %1489 = vmatpush2.msra.mxu0 0.0
    %1490 = vmatprep.subr.mxu0 0.0
    %1491 = vmatpush2.msra.mxu0 0.0
    %1492 = vmatprep.mubr.f32.mxu0 0.0
    %1493 = vmatmul.mubr.f32.gmra.mxu0 %v1426
    %v1494 = vpop.f32.mrf.mxu0
    %v1495 = vadd.f32 0.0, %v1494
    %v1496 = vpop.f32.mrf.mxu0
    %1497 = vdwg.mxu0
    %v1498 = vmul.f32 %v1419, %v1344
    %v1499 = vmul.f32 %v1495, %v1345
    %1502 = vrot.lane.b32.xlu0 %v822, 8
    %v1503 = vpop.permute.xlu0 %1502
    %1504 = vrot.lane.b32.xlu0 %v823, 8
    %v1505 = vpop.permute.xlu0 %1504
    %1510 = vrot.lane.b32.xlu0 %v1160, 16
    %v1511 = vpop.permute.xlu0 %1510
    %1512 = vrot.lane.b32.xlu0 %v1161, 16
    %v1513 = vpop.permute.xlu0 %1512
    %1518 = vrot.lane.b32.xlu0 %v1498, 24
    %v1519 = vpop.permute.xlu0 %1518
    %1520 = vrot.lane.b32.xlu0 %v1499, 24
    %v1521 = vpop.permute.xlu0 %1520
    %v1524 = vsel %vm148, %v484, %v1503
    %v1525 = vsel %vm148, %v485, %v1505
    %vm1526 = vcmask 130048
    %v1527 = vsel %vm1526, %v1524, %v1511
    %v1528 = vsel %vm1526, %v1525, %v1513
    %vm1529 = vcmask 195584
    %v1530 = vsel %vm1529, %v1527, %v1519
    %v1531 = vsel %vm1529, %v1528, %v1521
    %1532 = vst.msk [vmem:[#allocation7] sm:$0xff] %vm56, %v1530
    %1533 = vst.msk [vmem:[#allocation7 + $0x8] sm:$0xff] %vm56, %v1531
    // Predicated region
    $region22: #{tpu_custom_call.1} parent=1 // pred_check
      _
    $region23: #{tpu_custom_call.1} parent=1 // pred_check_branch
      %1535 = sbr.rel (0) target = $region25
    $region24: #{tpu_custom_call.1} parent=1 // pred_region
      %s1537 = ssub.s32 256, 256
      %1538 = vsyncadd [#allocation4], %s1537
      %s1539 = sshll.u32 [#allocation7], 4
      %s1540 = int_to_ptr.vmem [resolvable:$true] %s1539
      %1545 = dma.vmem_to_hbm [thread:$0]  %s1540, 256, %s3, [#allocation4], 128, 128, 8
    $region25: #{tpu_custom_call.1} parent=1 // pred_fallthru
      _
    // Predicated region
    $region26: #{tpu_custom_call.1} parent=1 // pred_check
      _
    $region27: #{tpu_custom_call.1} parent=1 // pred_check_branch
      %1547 = sbr.rel (0) target = $region29
    $region28: #{tpu_custom_call.1} parent=1 // pred_region
      %1548 = dma.done [#allocation4], 256
    $region29: #{tpu_custom_call.1} parent=1 // pred_fallthru
      _
    %1549 = vsyncpa [#allocation3], 1
    %1550 = vsyncpa [#allocation6], 1
    %1551 = vsyncpa [#allocation4], 1

</llo_original>
